<compile_context>
chip_gen: v7x
topology: tpu7x:2x2x1
jax: 0.10.0
libtpu: 0.0.40
codegen_flags: <defaults>
</compile_context>

<pallas_src>
import functools

import jax
import jax.numpy as jnp
from jax.experimental import pallas as pl
from jax.experimental.pallas import tpu as pltpu


# ---------------------------------------------------------------------------
# Config / parameter init (mirrors the nn.Conv1d shapes; stored as (K,Cin,Cout))
# ---------------------------------------------------------------------------
class Config:
    emb_dim = 32
    cnn_dim = 32
    shared_layers = 2
    dropout_prob = 0.5


def init_params(config, key):
    """conv[0]: k=3 (emb->cnn/2); conv[1]: k=5 (emb->cnn/2); conv[i+1]: k=5 (cnn->cnn).
    Stored as (K, Cin, Cout)."""
    params = []

    def make(key, cin, cout, k):
        kw, kb = jax.random.split(key)
        bound = 1.0 / jnp.sqrt(cin * k)
        w = jax.random.uniform(kw, (k, cin, cout), jnp.float32, -bound, bound)
        b = jax.random.uniform(kb, (cout,), jnp.float32, -bound, bound)
        return w, b

    half = config.cnn_dim // 2
    keys = jax.random.split(key, config.shared_layers + 1)
    params.append(make(keys[0], config.emb_dim, half, 3))   # conv[0], k=3 pad=1
    params.append(make(keys[1], config.emb_dim, half, 5))   # conv[1], k=5 pad=2
    for i in range(1, config.shared_layers):
        params.append(make(keys[i + 1], config.cnn_dim, config.cnn_dim, 5))
    return params


def _pick_batch_tile(B, L, target_rows=2048):
    """Batch tile so BT*L rows fill the MXU M dim / amortize per-step overhead.
    Never decrements to a degenerate tile: the wrapper pads B up to a multiple
    of BT instead.  Forces >= 2 grid steps so v7x's 2 TensorCores both work."""
    bt = max(1, min(B, target_rows // max(L, 1)))
    n_tiles = -(-B // bt)
    if n_tiles == 1 and B > 1:
        bt = -(-B // 2)
    return bt


# ---------------------------------------------------------------------------
# Fused forward kernel: all shared layers + output concat in one pallas_call.
# ---------------------------------------------------------------------------
def fused_cnn_kernel(x_ref, *refs, K, n_layers, emb_dim, cnn_dim, cmax,
                     pad_front, compute_dtype, aspect):
    # x_ref : (BT, L, emb) f32
    # refs  : (w0, b0, w1, b1, ..., [we_ref,] h_ref, scratch)
    #   wi : (K, Cin_i, Cout_i) compute_dtype   bi : (1, Cout_i) f32
    #   we_ref : (BT, L, emb + cnn*n_layers) f32   (aspect_model only)
    #   h_ref  : (BT, L, cnn) f32
    #   scratch: (BT, pad_front + L + pad, cmax) f32 persistent padded staging
    scratch = refs[-1]
    if aspect:
        we_ref, h_ref = refs[-3], refs[-2]
        wb = refs[:-3]
    else:
        h_ref = refs[-2]
        wb = refs[:-2]

    BT, L, _ = x_ref.shape
    pad = K // 2

    # Zero the pad rows once per grid step; the interior is overwritten per layer.
    scratch[:, :pad_front, :] = jnp.zeros((BT, pad_front, cmax), jnp.float32)
    scratch[:, pad_front + L:, :] = jnp.zeros((BT, pad, cmax), jnp.float32)

    def conv_relu(h, w_ref, b_ref, cin, cout):
        # Stage h (f32) into the sublane-aligned interior of the padded scratch,
        # then accumulate K tap matmuls on shifted windows (f32 accumulate).
        scratch[:, pad_front:pad_front + L, :cin] = h
        acc = jnp.zeros((BT * L, cout), jnp.float32)
        for k in range(K):
            start = pad_front - pad + k
            win = scratch[:, start:start + L, :cin]
            win = win.reshape(BT * L, cin).astype(compute_dtype)
            acc = acc + jnp.dot(win, w_ref[k],
                                preferred_element_type=jnp.float32)
        y = jnp.maximum(acc + b_ref[...], 0.0)
        return y.reshape(BT, L, cout)

    # TODO(synk): F.dropout in the PyTorch reference runs in training mode
    # (stochastic, scaled by 1/(1-p)); identity (inference mode) is used here.
    x = x_ref[...]                                      # f32 passthrough kept exact
    h = conv_relu(x, wb[0], wb[1], emb_dim, cnn_dim)    # fused k=3 || k=5 layer 0
    pieces = [x, h]
    for i in range(1, n_layers):
        h = conv_relu(h, wb[2 * i], wb[2 * i + 1], cnn_dim, cnn_dim)
        pieces.append(h)

    h_ref[...] = h.astype(h_ref.dtype)
    if aspect:
        we_ref[...] = jnp.concatenate(pieces, axis=-1).astype(we_ref.dtype)


def build_fused_params(params, config, compute_dtype):
    """Merge layer-0 branches into one k=5 conv (k=3 weights zero-padded to k=5,
    concatenated along Cout); keep per-tap (K, Cin, Cout) layout."""
    (w3, b3), (w5, b5) = params[0], params[1]
    w3p = jnp.pad(w3, ((1, 1), (0, 0), (0, 0)))            # k=3 -> k=5 (zero taps)
    w0 = jnp.concatenate([w3p, w5], axis=-1)                # (5, emb, cnn)
    b0 = jnp.concatenate([b3, b5], axis=-1)                 # (cnn,)
    layers = [(w0, b0)] + [params[i + 1] for i in range(1, config.shared_layers)]
    ws, bs = [], []
    for w, b in layers:
        ws.append(w.astype(compute_dtype))
        bs.append(b.reshape(1, -1).astype(jnp.float32))
    return ws, bs


def _fused_cnn_call(x, ws, bs, config, compute_dtype, aspect, BT):
    B, L, emb = x.shape          # B already padded to a multiple of BT
    cnn = config.cnn_dim
    n_layers = config.shared_layers
    K = 5
    pad = K // 2
    cmax = max(emb, cnn)
    we_width = emb + cnn * n_layers
    grid = (B // BT,)
    PAD_FRONT = 8                # sublane-aligned interior start (>= pad)

    in_specs = [pl.BlockSpec((BT, L, emb), lambda bi: (bi, 0, 0))]
    args = [x]
    for w, b in zip(ws, bs):
        in_specs.append(pl.BlockSpec(w.shape, lambda bi: (0, 0, 0)))
        in_specs.append(pl.BlockSpec(b.shape, lambda bi: (0, 0)))
        args.extend([w, b])

    if aspect:
        out_shape = (jax.ShapeDtypeStruct((B, L, we_width), jnp.float32),
                     jax.ShapeDtypeStruct((B, L, cnn), jnp.float32))
        out_specs = (pl.BlockSpec((BT, L, we_width), lambda bi: (bi, 0, 0)),
                     pl.BlockSpec((BT, L, cnn), lambda bi: (bi, 0, 0)))
        out_bytes = B * L * (we_width + cnn) * 4
    else:
        out_shape = jax.ShapeDtypeStruct((B, L, cnn), jnp.float32)
        out_specs = pl.BlockSpec((BT, L, cnn), lambda bi: (bi, 0, 0))
        out_bytes = B * L * cnn * 4

    kern = functools.partial(
        fused_cnn_kernel, K=K, n_layers=n_layers, emb_dim=emb, cnn_dim=cnn,
        cmax=cmax, pad_front=PAD_FRONT, compute_dtype=compute_dtype,
        aspect=aspect)

    flops = 0
    cin = emb
    for _ in range(n_layers):
        flops += 2 * B * L * K * cin * cnn
        cin = cnn
    bytes_accessed = (int(x.size) * x.dtype.itemsize
                      + sum(int(a.size) * a.dtype.itemsize for a in args[1:])
                      + out_bytes)

    return pl.pallas_call(
        kern,
        out_shape=out_shape,
        grid_spec=pltpu.PrefetchScalarGridSpec(
            num_scalar_prefetch=0,
            grid=grid,
            in_specs=in_specs,
            out_specs=out_specs,
            scratch_shapes=[
                pltpu.VMEM((BT, PAD_FRONT + L + pad, cmax), jnp.float32)]),
        compiler_params=pltpu.CompilerParams(
            dimension_semantics=("parallel",)),
        cost_estimate=pl.CostEstimate(
            flops=flops, transcendentals=0, bytes_accessed=bytes_accessed),
    )(*args)


def cnn_shared_forward(x, params, config, phrase, compute_dtype=None):
    """x: (B, L, emb_dim) f32.
    phrase=='aspect_model' -> (word_embeddings (B,L,emb+cnn*layers), h (B,L,cnn))
    else                   -> h (B,L,cnn)."""
    if compute_dtype is None:
        compute_dtype = jnp.bfloat16   # bf16 MXU inputs on every generation
    ws, bs = build_fused_params(params, config, compute_dtype)
    aspect = (phrase == 'aspect_model')

    B, L, _ = x.shape
    BT = _pick_batch_tile(B, L)
    Bp = (-(-B // BT)) * BT
    if Bp != B:                       # pad batch instead of shrinking the tile
        x = jnp.pad(x, ((0, Bp - B), (0, 0), (0, 0)))

    outs = _fused_cnn_call(x, ws, bs, config, compute_dtype, aspect, BT)
    if aspect:
        we, h = outs
        return we[:B], h[:B]
    return outs[:B]


# ---------------------------------------------------------------------------
# Pure-JAX reference (f32) for a sanity check.
# ---------------------------------------------------------------------------
def reference_forward(x, params, config, phrase):
    def conv_relu(h, w, b, padding):
        K = w.shape[0]
        L = h.shape[1]
        hp = jnp.pad(h, ((0, 0), (padding, padding), (0, 0)))
        acc = sum(jnp.dot(hp[:, k:k + L, :], w[k]) for k in range(K)) + b
        return jnp.maximum(acc, 0.0)

    we = x
    h = x
    for i in range(config.shared_layers):
        if i == 0:
            y1 = conv_relu(h, params[0][0], params[0][1], 1)
            y2 = conv_relu(h, params[1][0], params[1][1], 2)
            h = jnp.concatenate([y1, y2], axis=-1)
        else:
            h = conv_relu(h, params[i + 1][0], params[i + 1][1], 2)
        we = jnp.concatenate([we, h], axis=-1)
    if phrase == 'aspect_model':
        return we, h
    return h


if __name__ == "__main__":
    config = Config()
    key = jax.random.PRNGKey(0)
    kp, kx = jax.random.split(key)
    params = init_params(config, kp)

    B, L = 2, 8
    x = jax.random.normal(kx, (B, L, config.emb_dim), jnp.float32)

    we_ref, h_ref = reference_forward(x, params, config, 'aspect_model')
    we_width = config.emb_dim + config.cnn_dim * config.shared_layers

    # f32 compute path: tight check against the pure-JAX reference.
    we32, h32 = cnn_shared_forward(x, params, config, 'aspect_model',
                                   compute_dtype=jnp.float32)
    jax.block_until_ready((we32, h32))
    assert we32.shape == (B, L, we_width)
    assert h32.shape == (B, L, config.cnn_dim)
    assert float(jnp.max(jnp.abs(we32 - we_ref))) < 1e-4
    assert float(jnp.max(jnp.abs(h32 - h_ref))) < 1e-4

    # Default (bf16 MXU-input) path: loose tolerance, exact emb passthrough.
    we, h = cnn_shared_forward(x, params, config, 'aspect_model')
    jax.block_until_ready((we, h))
    assert we.shape == (B, L, we_width)
    assert h.shape == (B, L, config.cnn_dim)
    assert float(jnp.max(jnp.abs(we - we_ref))) < 1.5e-1
    assert float(jnp.max(jnp.abs(h - h_ref))) < 1.5e-1
    assert float(jnp.max(jnp.abs(we[..., :config.emb_dim] - x))) < 1e-6

    # Non-aspect path: only h is produced / written.
    h_only = cnn_shared_forward(x, params, config, 'other')
    jax.block_until_ready(h_only)
    assert h_only.shape == (B, L, config.cnn_dim)
    assert float(jnp.max(jnp.abs(h_only - h_ref))) < 1.5e-1

    print("KERNEL_OK")
</pallas_src>

<mosaic_0001>
module attributes {stable_mosaic.version = 11 : i64} {
  func.func @fused_cnn_kernel(%arg0: i32, %arg1: memref<1x8x32xf32, #tpu.memory_space<vmem>>, %arg2: memref<5x32x32xf32, #tpu.memory_space<vmem>>, %arg3: memref<1x32xf32, #tpu.memory_space<vmem>>, %arg4: memref<5x32x32xf32, #tpu.memory_space<vmem>>, %arg5: memref<1x32xf32, #tpu.memory_space<vmem>>, %arg6: memref<1x8x96xf32, #tpu.memory_space<vmem>>, %arg7: memref<1x8x32xf32, #tpu.memory_space<vmem>>, %arg8: memref<1x18x32xf32, #tpu.memory_space<vmem>>) attributes {dimension_semantics = [#tpu.dimension_semantics<parallel>], iteration_bounds = array<i64: 2>, scalar_prefetch = 0 : i64, scratch_operands = 1 : i64, tpu.core_type = #tpu.core_type<tc>, window_params = [{transform_indices = @transform_0, window_bounds = array<i64: 1, 8, 32>}, {pipeline_mode = #tpu.pipeline_mode<synchronous>, transform_indices = @transform_1, window_bounds = array<i64: 5, 32, 32>}, {pipeline_mode = #tpu.pipeline_mode<synchronous>, transform_indices = @transform_2, window_bounds = array<i64: 1, 32>}, {pipeline_mode = #tpu.pipeline_mode<synchronous>, transform_indices = @transform_3, window_bounds = array<i64: 5, 32, 32>}, {pipeline_mode = #tpu.pipeline_mode<synchronous>, transform_indices = @transform_4, window_bounds = array<i64: 1, 32>}, {transform_indices = @transform_5, window_bounds = array<i64: 1, 8, 96>}, {transform_indices = @transform_6, window_bounds = array<i64: 1, 8, 32>}]} {
    %cst = arith.constant 0.000000e+00 : f32
    %0 = vector.broadcast %cst : f32 to vector<1x8x32xf32>
    %c0 = arith.constant 0 : index
    %c0_0 = arith.constant 0 : index
    %c0_1 = arith.constant 0 : index
    %1 = vector.load %arg8[%c0, %c0_0, %c0_1] : memref<1x18x32xf32, #tpu.memory_space<vmem>>, vector<1x8x32xf32>
    tpu.vector_store %arg8[%c0, %c0_0, %c0_1], %0 {strides = array<i32>} : memref<1x18x32xf32, #tpu.memory_space<vmem>>, vector<1x8x32xf32>,
    %cst_2 = arith.constant 0.000000e+00 : f32
    %2 = vector.broadcast %cst_2 : f32 to vector<1x2x32xf32>
    %c0_3 = arith.constant 0 : index
    %c16 = arith.constant 16 : index
    %c0_4 = arith.constant 0 : index
    %3 = vector.load %arg8[%c0_3, %c16, %c0_4] : memref<1x18x32xf32, #tpu.memory_space<vmem>>, vector<1x2x32xf32>
    tpu.vector_store %arg8[%c0_3, %c16, %c0_4], %2 {strides = array<i32>} : memref<1x18x32xf32, #tpu.memory_space<vmem>>, vector<1x2x32xf32>,
    %c0_5 = arith.constant 0 : index
    %c0_6 = arith.constant 0 : index
    %c0_7 = arith.constant 0 : index
    %4 = vector.load %arg1[%c0_5, %c0_6, %c0_7] : memref<1x8x32xf32, #tpu.memory_space<vmem>>, vector<1x8x32xf32>
    %c0_8 = arith.constant 0 : index
    %c8 = arith.constant 8 : index
    %c0_9 = arith.constant 0 : index
    %5 = vector.load %arg8[%c0_8, %c8, %c0_9] : memref<1x18x32xf32, #tpu.memory_space<vmem>>, vector<1x8x32xf32>
    tpu.vector_store %arg8[%c0_8, %c8, %c0_9], %4 {strides = array<i32>} : memref<1x18x32xf32, #tpu.memory_space<vmem>>, vector<1x8x32xf32>,
    %cst_10 = arith.constant 0.000000e+00 : f32
    %6 = vector.broadcast %cst_10 : f32 to vector<8x32xf32>
    %c0_11 = arith.constant 0 : index
    %c6 = arith.constant 6 : index
    %c0_12 = arith.constant 0 : index
    %7 = vector.load %arg8[%c0_11, %c6, %c0_12] : memref<1x18x32xf32, #tpu.memory_space<vmem>>, vector<1x8x32xf32>
    %8 = vector.shape_cast %7 : vector<1x8x32xf32> to vector<8x32xf32>
    %c0_13 = arith.constant 0 : index
    %c0_14 = arith.constant 0 : index
    %c0_15 = arith.constant 0 : index
    %9 = vector.load %arg2[%c0_13, %c0_14, %c0_15] : memref<5x32x32xf32, #tpu.memory_space<vmem>>, vector<1x32x32xf32>
    %10 = vector.shape_cast %9 : vector<1x32x32xf32> to vector<32x32xf32>
    %cst_16 = arith.constant dense<0.000000e+00> : vector<8x32xf32>
    %11 = tpu.matmul %8, %10, %cst_16 {dimension_numbers = #tpu.dot_dimension_numbers<[1], [0], [0], [1], [0, 0, 1, 1], [], []>} : vector<8x32xf32>, vector<32x32xf32>, vector<8x32xf32> -> vector<8x32xf32>
    %12 = arith.addf %6, %11 : vector<8x32xf32>
    %c0_17 = arith.constant 0 : index
    %c7 = arith.constant 7 : index
    %c0_18 = arith.constant 0 : index
    %13 = vector.load %arg8[%c0_17, %c7, %c0_18] : memref<1x18x32xf32, #tpu.memory_space<vmem>>, vector<1x8x32xf32>
    %14 = vector.shape_cast %13 : vector<1x8x32xf32> to vector<8x32xf32>
    %c1 = arith.constant 1 : index
    %c0_19 = arith.constant 0 : index
    %c0_20 = arith.constant 0 : index
    %15 = vector.load %arg2[%c1, %c0_19, %c0_20] : memref<5x32x32xf32, #tpu.memory_space<vmem>>, vector<1x32x32xf32>
    %16 = vector.shape_cast %15 : vector<1x32x32xf32> to vector<32x32xf32>
    %cst_21 = arith.constant dense<0.000000e+00> : vector<8x32xf32>
    %17 = tpu.matmul %14, %16, %cst_21 {dimension_numbers = #tpu.dot_dimension_numbers<[1], [0], [0], [1], [0, 0, 1, 1], [], []>} : vector<8x32xf32>, vector<32x32xf32>, vector<8x32xf32> -> vector<8x32xf32>
    %18 = arith.addf %12, %17 : vector<8x32xf32>
    %c0_22 = arith.constant 0 : index
    %c8_23 = arith.constant 8 : index
    %c0_24 = arith.constant 0 : index
    %19 = vector.load %arg8[%c0_22, %c8_23, %c0_24] : memref<1x18x32xf32, #tpu.memory_space<vmem>>, vector<1x8x32xf32>
    %20 = vector.shape_cast %19 : vector<1x8x32xf32> to vector<8x32xf32>
    %c2 = arith.constant 2 : index
    %c0_25 = arith.constant 0 : index
    %c0_26 = arith.constant 0 : index
    %21 = vector.load %arg2[%c2, %c0_25, %c0_26] : memref<5x32x32xf32, #tpu.memory_space<vmem>>, vector<1x32x32xf32>
    %22 = vector.shape_cast %21 : vector<1x32x32xf32> to vector<32x32xf32>
    %cst_27 = arith.constant dense<0.000000e+00> : vector<8x32xf32>
    %23 = tpu.matmul %20, %22, %cst_27 {dimension_numbers = #tpu.dot_dimension_numbers<[1], [0], [0], [1], [0, 0, 1, 1], [], []>} : vector<8x32xf32>, vector<32x32xf32>, vector<8x32xf32> -> vector<8x32xf32>
    %24 = arith.addf %18, %23 : vector<8x32xf32>
    %c0_28 = arith.constant 0 : index
    %c9 = arith.constant 9 : index
    %c0_29 = arith.constant 0 : index
    %25 = vector.load %arg8[%c0_28, %c9, %c0_29] : memref<1x18x32xf32, #tpu.memory_space<vmem>>, vector<1x8x32xf32>
    %26 = vector.shape_cast %25 : vector<1x8x32xf32> to vector<8x32xf32>
    %c3 = arith.constant 3 : index
    %c0_30 = arith.constant 0 : index
    %c0_31 = arith.constant 0 : index
    %27 = vector.load %arg2[%c3, %c0_30, %c0_31] : memref<5x32x32xf32, #tpu.memory_space<vmem>>, vector<1x32x32xf32>
    %28 = vector.shape_cast %27 : vector<1x32x32xf32> to vector<32x32xf32>
    %cst_32 = arith.constant dense<0.000000e+00> : vector<8x32xf32>
    %29 = tpu.matmul %26, %28, %cst_32 {dimension_numbers = #tpu.dot_dimension_numbers<[1], [0], [0], [1], [0, 0, 1, 1], [], []>} : vector<8x32xf32>, vector<32x32xf32>, vector<8x32xf32> -> vector<8x32xf32>
    %30 = arith.addf %24, %29 : vector<8x32xf32>
    %c0_33 = arith.constant 0 : index
    %c10 = arith.constant 10 : index
    %c0_34 = arith.constant 0 : index
    %31 = vector.load %arg8[%c0_33, %c10, %c0_34] : memref<1x18x32xf32, #tpu.memory_space<vmem>>, vector<1x8x32xf32>
    %32 = vector.shape_cast %31 : vector<1x8x32xf32> to vector<8x32xf32>
    %c4 = arith.constant 4 : index
    %c0_35 = arith.constant 0 : index
    %c0_36 = arith.constant 0 : index
    %33 = vector.load %arg2[%c4, %c0_35, %c0_36] : memref<5x32x32xf32, #tpu.memory_space<vmem>>, vector<1x32x32xf32>
    %34 = vector.shape_cast %33 : vector<1x32x32xf32> to vector<32x32xf32>
    %cst_37 = arith.constant dense<0.000000e+00> : vector<8x32xf32>
    %35 = tpu.matmul %32, %34, %cst_37 {dimension_numbers = #tpu.dot_dimension_numbers<[1], [0], [0], [1], [0, 0, 1, 1], [], []>} : vector<8x32xf32>, vector<32x32xf32>, vector<8x32xf32> -> vector<8x32xf32>
    %36 = arith.addf %30, %35 : vector<8x32xf32>
    %c0_38 = arith.constant 0 : index
    %c0_39 = arith.constant 0 : index
    %37 = vector.load %arg3[%c0_38, %c0_39] : memref<1x32xf32, #tpu.memory_space<vmem>>, vector<1x32xf32>
    %38 = vector.broadcast %37 : vector<1x32xf32> to vector<8x32xf32>
    %39 = arith.addf %36, %38 : vector<8x32xf32>
    %cst_40 = arith.constant 0.000000e+00 : f32
    %40 = vector.broadcast %cst_40 : f32 to vector<8x32xf32>
    %41 = arith.maximumf %39, %40 : vector<8x32xf32>
    %42 = vector.shape_cast %41 : vector<8x32xf32> to vector<1x8x32xf32>
    %c0_41 = arith.constant 0 : index
    %c8_42 = arith.constant 8 : index
    %c0_43 = arith.constant 0 : index
    %43 = vector.load %arg8[%c0_41, %c8_42, %c0_43] : memref<1x18x32xf32, #tpu.memory_space<vmem>>, vector<1x8x32xf32>
    tpu.vector_store %arg8[%c0_41, %c8_42, %c0_43], %42 {strides = array<i32>} : memref<1x18x32xf32, #tpu.memory_space<vmem>>, vector<1x8x32xf32>,
    %cst_44 = arith.constant 0.000000e+00 : f32
    %44 = vector.broadcast %cst_44 : f32 to vector<8x32xf32>
    %c0_45 = arith.constant 0 : index
    %c6_46 = arith.constant 6 : index
    %c0_47 = arith.constant 0 : index
    %45 = vector.load %arg8[%c0_45, %c6_46, %c0_47] : memref<1x18x32xf32, #tpu.memory_space<vmem>>, vector<1x8x32xf32>
    %46 = vector.shape_cast %45 : vector<1x8x32xf32> to vector<8x32xf32>
    %c0_48 = arith.constant 0 : index
    %c0_49 = arith.constant 0 : index
    %c0_50 = arith.constant 0 : index
    %47 = vector.load %arg4[%c0_48, %c0_49, %c0_50] : memref<5x32x32xf32, #tpu.memory_space<vmem>>, vector<1x32x32xf32>
    %48 = vector.shape_cast %47 : vector<1x32x32xf32> to vector<32x32xf32>
    %cst_51 = arith.constant dense<0.000000e+00> : vector<8x32xf32>
    %49 = tpu.matmul %46, %48, %cst_51 {dimension_numbers = #tpu.dot_dimension_numbers<[1], [0], [0], [1], [0, 0, 1, 1], [], []>} : vector<8x32xf32>, vector<32x32xf32>, vector<8x32xf32> -> vector<8x32xf32>
    %50 = arith.addf %44, %49 : vector<8x32xf32>
    %c0_52 = arith.constant 0 : index
    %c7_53 = arith.constant 7 : index
    %c0_54 = arith.constant 0 : index
    %51 = vector.load %arg8[%c0_52, %c7_53, %c0_54] : memref<1x18x32xf32, #tpu.memory_space<vmem>>, vector<1x8x32xf32>
    %52 = vector.shape_cast %51 : vector<1x8x32xf32> to vector<8x32xf32>
    %c1_55 = arith.constant 1 : index
    %c0_56 = arith.constant 0 : index
    %c0_57 = arith.constant 0 : index
    %53 = vector.load %arg4[%c1_55, %c0_56, %c0_57] : memref<5x32x32xf32, #tpu.memory_space<vmem>>, vector<1x32x32xf32>
    %54 = vector.shape_cast %53 : vector<1x32x32xf32> to vector<32x32xf32>
    %cst_58 = arith.constant dense<0.000000e+00> : vector<8x32xf32>
    %55 = tpu.matmul %52, %54, %cst_58 {dimension_numbers = #tpu.dot_dimension_numbers<[1], [0], [0], [1], [0, 0, 1, 1], [], []>} : vector<8x32xf32>, vector<32x32xf32>, vector<8x32xf32> -> vector<8x32xf32>
    %56 = arith.addf %50, %55 : vector<8x32xf32>
    %c0_59 = arith.constant 0 : index
    %c8_60 = arith.constant 8 : index
    %c0_61 = arith.constant 0 : index
    %57 = vector.load %arg8[%c0_59, %c8_60, %c0_61] : memref<1x18x32xf32, #tpu.memory_space<vmem>>, vector<1x8x32xf32>
    %58 = vector.shape_cast %57 : vector<1x8x32xf32> to vector<8x32xf32>
    %c2_62 = arith.constant 2 : index
    %c0_63 = arith.constant 0 : index
    %c0_64 = arith.constant 0 : index
    %59 = vector.load %arg4[%c2_62, %c0_63, %c0_64] : memref<5x32x32xf32, #tpu.memory_space<vmem>>, vector<1x32x32xf32>
    %60 = vector.shape_cast %59 : vector<1x32x32xf32> to vector<32x32xf32>
    %cst_65 = arith.constant dense<0.000000e+00> : vector<8x32xf32>
    %61 = tpu.matmul %58, %60, %cst_65 {dimension_numbers = #tpu.dot_dimension_numbers<[1], [0], [0], [1], [0, 0, 1, 1], [], []>} : vector<8x32xf32>, vector<32x32xf32>, vector<8x32xf32> -> vector<8x32xf32>
    %62 = arith.addf %56, %61 : vector<8x32xf32>
    %c0_66 = arith.constant 0 : index
    %c9_67 = arith.constant 9 : index
    %c0_68 = arith.constant 0 : index
    %63 = vector.load %arg8[%c0_66, %c9_67, %c0_68] : memref<1x18x32xf32, #tpu.memory_space<vmem>>, vector<1x8x32xf32>
    %64 = vector.shape_cast %63 : vector<1x8x32xf32> to vector<8x32xf32>
    %c3_69 = arith.constant 3 : index
    %c0_70 = arith.constant 0 : index
    %c0_71 = arith.constant 0 : index
    %65 = vector.load %arg4[%c3_69, %c0_70, %c0_71] : memref<5x32x32xf32, #tpu.memory_space<vmem>>, vector<1x32x32xf32>
    %66 = vector.shape_cast %65 : vector<1x32x32xf32> to vector<32x32xf32>
    %cst_72 = arith.constant dense<0.000000e+00> : vector<8x32xf32>
    %67 = tpu.matmul %64, %66, %cst_72 {dimension_numbers = #tpu.dot_dimension_numbers<[1], [0], [0], [1], [0, 0, 1, 1], [], []>} : vector<8x32xf32>, vector<32x32xf32>, vector<8x32xf32> -> vector<8x32xf32>
    %68 = arith.addf %62, %67 : vector<8x32xf32>
    %c0_73 = arith.constant 0 : index
    %c10_74 = arith.constant 10 : index
    %c0_75 = arith.constant 0 : index
    %69 = vector.load %arg8[%c0_73, %c10_74, %c0_75] : memref<1x18x32xf32, #tpu.memory_space<vmem>>, vector<1x8x32xf32>
    %70 = vector.shape_cast %69 : vector<1x8x32xf32> to vector<8x32xf32>
    %c4_76 = arith.constant 4 : index
    %c0_77 = arith.constant 0 : index
    %c0_78 = arith.constant 0 : index
    %71 = vector.load %arg4[%c4_76, %c0_77, %c0_78] : memref<5x32x32xf32, #tpu.memory_space<vmem>>, vector<1x32x32xf32>
    %72 = vector.shape_cast %71 : vector<1x32x32xf32> to vector<32x32xf32>
    %cst_79 = arith.constant dense<0.000000e+00> : vector<8x32xf32>
    %73 = tpu.matmul %70, %72, %cst_79 {dimension_numbers = #tpu.dot_dimension_numbers<[1], [0], [0], [1], [0, 0, 1, 1], [], []>} : vector<8x32xf32>, vector<32x32xf32>, vector<8x32xf32> -> vector<8x32xf32>
    %74 = arith.addf %68, %73 : vector<8x32xf32>
    %c0_80 = arith.constant 0 : index
    %c0_81 = arith.constant 0 : index
    %75 = vector.load %arg5[%c0_80, %c0_81] : memref<1x32xf32, #tpu.memory_space<vmem>>, vector<1x32xf32>
    %76 = vector.broadcast %75 : vector<1x32xf32> to vector<8x32xf32>
    %77 = arith.addf %74, %76 : vector<8x32xf32>
    %cst_82 = arith.constant 0.000000e+00 : f32
    %78 = vector.broadcast %cst_82 : f32 to vector<8x32xf32>
    %79 = arith.maximumf %77, %78 : vector<8x32xf32>
    %80 = vector.shape_cast %79 : vector<8x32xf32> to vector<1x8x32xf32>
    %c0_83 = arith.constant 0 : index
    %c0_84 = arith.constant 0 : index
    %c0_85 = arith.constant 0 : index
    %81 = vector.load %arg7[%c0_83, %c0_84, %c0_85] : memref<1x8x32xf32, #tpu.memory_space<vmem>>, vector<1x8x32xf32>
    tpu.vector_store %arg7[%c0_83, %c0_84, %c0_85], %80 {strides = array<i32>} : memref<1x8x32xf32, #tpu.memory_space<vmem>>, vector<1x8x32xf32>,
    %82 = tpu.concatenate %4, %42, %80 in 2 : vector<1x8x32xf32>, vector<1x8x32xf32>, vector<1x8x32xf32> -> vector<1x8x96xf32>
    %c0_86 = arith.constant 0 : index
    %c0_87 = arith.constant 0 : index
    %c0_88 = arith.constant 0 : index
    %83 = vector.load %arg6[%c0_86, %c0_87, %c0_88] : memref<1x8x96xf32, #tpu.memory_space<vmem>>, vector<1x8x96xf32>
    tpu.vector_store %arg6[%c0_86, %c0_87, %c0_88], %82 {strides = array<i32>} : memref<1x8x96xf32, #tpu.memory_space<vmem>>, vector<1x8x96xf32>,
    return
  }
  func.func @transform_0(%arg0: i32) -> (i32, i32, i32) {
    %c0_i32 = arith.constant 0 : i32
    %c0_i32_0 = arith.constant 0 : i32
    %c0_i32_1 = arith.constant 0 : i32
    return %arg0, %c0_i32, %c0_i32_0 : i32, i32, i32
  }
  func.func @transform_1(%arg0: i32) -> (i32, i32, i32) {
    %c0_i32 = arith.constant 0 : i32
    %c0_i32_0 = arith.constant 0 : i32
    %c0_i32_1 = arith.constant 0 : i32
    %c0_i32_2 = arith.constant 0 : i32
    return %c0_i32, %c0_i32_0, %c0_i32_1 : i32, i32, i32
  }
  func.func @transform_2(%arg0: i32) -> (i32, i32) {
    %c0_i32 = arith.constant 0 : i32
    %c0_i32_0 = arith.constant 0 : i32
    %c0_i32_1 = arith.constant 0 : i32
    return %c0_i32, %c0_i32_0 : i32, i32
  }
  func.func @transform_3(%arg0: i32) -> (i32, i32, i32) {
    %c0_i32 = arith.constant 0 : i32
    %c0_i32_0 = arith.constant 0 : i32
    %c0_i32_1 = arith.constant 0 : i32
    %c0_i32_2 = arith.constant 0 : i32
    return %c0_i32, %c0_i32_0, %c0_i32_1 : i32, i32, i32
  }
  func.func @transform_4(%arg0: i32) -> (i32, i32) {
    %c0_i32 = arith.constant 0 : i32
    %c0_i32_0 = arith.constant 0 : i32
    %c0_i32_1 = arith.constant 0 : i32
    return %c0_i32, %c0_i32_0 : i32, i32
  }
  func.func @transform_5(%arg0: i32) -> (i32, i32, i32) {
    %c0_i32 = arith.constant 0 : i32
    %c0_i32_0 = arith.constant 0 : i32
    %c0_i32_1 = arith.constant 0 : i32
    return %arg0, %c0_i32, %c0_i32_0 : i32, i32, i32
  }
  func.func @transform_6(%arg0: i32) -> (i32, i32, i32) {
    %c0_i32 = arith.constant 0 : i32
    %c0_i32_0 = arith.constant 0 : i32
    %c0_i32_1 = arith.constant 0 : i32
    return %arg0, %c0_i32, %c0_i32_0 : i32, i32, i32
  }
}

</mosaic_0001>

<llo_original>
// kernel: tpu_custom_call.1
$region0: #{tpu_custom_call.1}
  #allocation0 [shape = 'u32[]', space=smem, size = 0x4, offset = 0x4, fixed_abs, tag = 'smem constant byte address 0x4 - core index']
  #allocation1 [shape = 'u32[144,128]{1,0:T(1,128)}', space=vmem, size = 0x12000, scoped, tag = 'internal scratch']
  #allocation2 [shape = 'f32[1,18,32]{2,1,0:T(8,128)}', space=vmem, size = 0x3000, scoped, tag = 'scratch operand']
  %s0 = inlined_call_operand.hbm [shape: f32[2,8,32], index: 0, kind: input, shape index: {}]
  %s1 = inlined_call_operand.hbm [shape: f32[5,32,32], index: 1, kind: input, shape index: {}]
  %s2 = inlined_call_operand.vmem [shape: f32[1,32], index: 2, kind: input, shape index: {}]
  %s3 = inlined_call_operand.hbm [shape: f32[5,32,32], index: 3, kind: input, shape index: {}]
  %s4 = inlined_call_operand.vmem [shape: f32[1,32], index: 4, kind: input, shape index: {}]
  %s5 = inlined_call_operand.hbm [shape: f32[2,8,96], index: 5, kind: output, shape index: {0}]
  %s6 = inlined_call_operand.hbm [shape: f32[2,8,32], index: 6, kind: output, shape index: {1}]
  %7 = xla_tuple %s5, %s6
  %s8 = sld [smem:[#allocation0]]
  $region73: #{tpu_custom_call.1} parent=0
    _
  %s10 = ssub.s32 1, %s8
  %s11 = scalar_select 0, %s10, %s8
  $region1: #{tpu_custom_call.1} parent=0
    #allocation3 [shape = 'u8[8192]{0}', space=vmem, size = 0x2000, scoped, tag = 'input window, operand 0']
    #allocation4 [shape = 's32[2]{0}', space=sflag, size = 0x8, scoped, tag = 'scoped memory for tpu_custom_call.1']
    #allocation5 [shape = 's32[2]{0}', space=sflag, size = 0x8, scoped, tag = 'scoped memory for tpu_custom_call.1']
    #allocation6 [shape = 'u8[81920]{0}', space=vmem, size = 0x14000, scoped, tag = 'input window, operand 1, single buffered']
    #allocation7 [shape = 's32[1]{0}', space=sflag, size = 0x4, scoped, tag = 'scoped memory for tpu_custom_call.1']
    #allocation8 [shape = 'u8[81920]{0}', space=vmem, size = 0x14000, scoped, tag = 'input window, operand 3, single buffered']
    #allocation9 [shape = 'u8[8192]{0}', space=vmem, size = 0x2000, scoped, tag = 'output window, operand 0']
    #allocation10 [shape = 'u8[8192]{0}', space=vmem, size = 0x2000, scoped, tag = 'output window, operand 1']
    #allocation11 [shape = 's32[2]{0}', space=sflag, size = 0x8, scoped, tag = 'scoped memory for tpu_custom_call.1']
    %12 = vsyncpa [#allocation4], 0
    %s13 = scalar_lea.sflag [#allocation4], 1
    %14 = vsyncpa %s13, 0
    %15 = vsyncpa [#allocation7], 0
    %16 = vsyncpa [#allocation5], 0
    %s17 = scalar_lea.sflag [#allocation5], 1
    %18 = vsyncpa %s17, 0
    %19 = vsyncpa [#allocation11], 0
    %s20 = scalar_lea.sflag [#allocation11], 1
    %21 = vsyncpa %s20, 0
    loop: start=0, step=1, limit=4
    $region2: #{tpu_custom_call.1} parent=1 // loop_pre_header
      _
    $region3: #{tpu_custom_call.1} parent=1 // loop_header
      %s23 = sphi 0, %s27
      %p24 = scmp.ge.s32.totalorder %s23, 4
      %s33 = sphi 0, %s35
      %s36 = sphi 0, %s33
      %s37 = sphi 0, %s36
      %s53 = sphi 0, %s37
      %s57 = sphi 0, %s57
      %s59 = sphi 0, %s57
      %s60 = sphi 0, %s59
      %s74 = sphi 0, %s60
      %s78 = sphi 0, %s78
      %s80 = sphi 0, %s78
      %s81 = sphi 0, %s80
      %s95 = sphi 0, %s81
      %s99 = sphi 0, %s99
      %s101 = sphi 0, %s99
      %s102 = sphi 0, %s101
      %s116 = sphi 0, %s102
      %s120 = sphi 0, %s120
      %s122 = sphi 0, %s120
      %s123 = sphi 0, %s122
      %s137 = sphi 0, %s123
      %s143 = sphi 0, %s145
      %s146 = sphi 0, %s143
      %s147 = sphi 0, %s146
      %s163 = sphi 0, %s147
      %s169 = sphi 0, %s171
      %s172 = sphi 0, %s169
      %s173 = sphi 0, %s172
      %s189 = sphi 0, %s173
    $region4: #{tpu_custom_call.1} parent=1 // loop_header_branch
      %26 = sbr.rel (%p24) target = $region8
    $region5: #{tpu_custom_call.1} parent=1 // loop_body
      %s28 = ssub.s32 %s23, 1
      %s29 = ssub.s32 %s23, 2
      %s30 = sadd.s32 %s23, 1
      %s31 = ssub.s32 %s23, %s30
      %p32 = scmp.eq.s32.totalorder %s31, 0
      %s34 = sadd.s32 %s33, 1
      %s35 = scalar_select %p32, %s33, %s34
      %p38 = pneg %p32
      %p39 = scmp.eq.s32.totalorder %s23, 1
      %p40 = por %p38, %p39
      %p41 = scmp.ne.s32.totalorder %s33, %s36
      %p42 = scmp.eq.s32.totalorder %s23, 0
      %p43 = por %p41, %p42
      %p44 = scmp.ne.s32.totalorder %s33, %s36
      %p45 = scmp.eq.s32.totalorder %s28, 1
      %p46 = por %p44, %p45
      %p47 = scmp.ne.s32.totalorder %s36, %s37
      %p48 = scmp.eq.s32.totalorder %s28, 0
      %p49 = por %p47, %p48
      %p50 = scmp.ne.s32.totalorder %s36, %s37
      %p51 = scmp.eq.s32.totalorder %s29, 1
      %p52 = por %p50, %p51
      %p54 = scmp.ne.s32.totalorder %s37, %s53
      %p55 = scmp.eq.s32.totalorder %s29, 0
      %p56 = por %p54, %p55
      %s58 = sadd.s32 %s57, 1
      %p61 = scmp.eq.s32.totalorder %s23, 1
      %p62 = scmp.ne.s32.totalorder %s57, %s59
      %p63 = scmp.eq.s32.totalorder %s23, 0
      %p64 = por %p62, %p63
      %p65 = scmp.ne.s32.totalorder %s57, %s59
      %p66 = scmp.eq.s32.totalorder %s28, 1
      %p67 = por %p65, %p66
      %p68 = scmp.ne.s32.totalorder %s59, %s60
      %p69 = scmp.eq.s32.totalorder %s28, 0
      %p70 = por %p68, %p69
      %p71 = scmp.ne.s32.totalorder %s59, %s60
      %p72 = scmp.eq.s32.totalorder %s29, 1
      %p73 = por %p71, %p72
      %p75 = scmp.ne.s32.totalorder %s60, %s74
      %p76 = scmp.eq.s32.totalorder %s29, 0
      %p77 = por %p75, %p76
      %s79 = sadd.s32 %s78, 1
      %p82 = scmp.eq.s32.totalorder %s23, 1
      %p83 = scmp.ne.s32.totalorder %s78, %s80
      %p84 = scmp.eq.s32.totalorder %s23, 0
      %p85 = por %p83, %p84
      %p86 = scmp.ne.s32.totalorder %s78, %s80
      %p87 = scmp.eq.s32.totalorder %s28, 1
      %p88 = por %p86, %p87
      %p89 = scmp.ne.s32.totalorder %s80, %s81
      %p90 = scmp.eq.s32.totalorder %s28, 0
      %p91 = por %p89, %p90
      %p92 = scmp.ne.s32.totalorder %s80, %s81
      %p93 = scmp.eq.s32.totalorder %s29, 1
      %p94 = por %p92, %p93
      %p96 = scmp.ne.s32.totalorder %s81, %s95
      %p97 = scmp.eq.s32.totalorder %s29, 0
      %p98 = por %p96, %p97
      %s100 = sadd.s32 %s99, 1
      %p103 = scmp.eq.s32.totalorder %s23, 1
      %p104 = scmp.ne.s32.totalorder %s99, %s101
      %p105 = scmp.eq.s32.totalorder %s23, 0
      %p106 = por %p104, %p105
      %p107 = scmp.ne.s32.totalorder %s99, %s101
      %p108 = scmp.eq.s32.totalorder %s28, 1
      %p109 = por %p107, %p108
      %p110 = scmp.ne.s32.totalorder %s101, %s102
      %p111 = scmp.eq.s32.totalorder %s28, 0
      %p112 = por %p110, %p111
      %p113 = scmp.ne.s32.totalorder %s101, %s102
      %p114 = scmp.eq.s32.totalorder %s29, 1
      %p115 = por %p113, %p114
      %p117 = scmp.ne.s32.totalorder %s102, %s116
      %p118 = scmp.eq.s32.totalorder %s29, 0
      %p119 = por %p117, %p118
      %s121 = sadd.s32 %s120, 1
      %p124 = scmp.eq.s32.totalorder %s23, 1
      %p125 = scmp.ne.s32.totalorder %s120, %s122
      %p126 = scmp.eq.s32.totalorder %s23, 0
      %p127 = por %p125, %p126
      %p128 = scmp.ne.s32.totalorder %s120, %s122
      %p129 = scmp.eq.s32.totalorder %s28, 1
      %p130 = por %p128, %p129
      %p131 = scmp.ne.s32.totalorder %s122, %s123
      %p132 = scmp.eq.s32.totalorder %s28, 0
      %p133 = por %p131, %p132
      %p134 = scmp.ne.s32.totalorder %s122, %s123
      %p135 = scmp.eq.s32.totalorder %s29, 1
      %p136 = por %p134, %p135
      %p138 = scmp.ne.s32.totalorder %s123, %s137
      %p139 = scmp.eq.s32.totalorder %s29, 0
      %p140 = por %p138, %p139
      %s141 = ssub.s32 %s23, %s30
      %p142 = scmp.eq.s32.totalorder %s141, 0
      %s144 = sadd.s32 %s143, 1
      %s145 = scalar_select %p142, %s143, %s144
      %p148 = pneg %p142
      %p149 = scmp.eq.s32.totalorder %s23, 1
      %p150 = por %p148, %p149
      %p151 = scmp.ne.s32.totalorder %s143, %s146
      %p152 = scmp.eq.s32.totalorder %s23, 0
      %p153 = por %p151, %p152
      %p154 = scmp.ne.s32.totalorder %s143, %s146
      %p155 = scmp.eq.s32.totalorder %s28, 1
      %p156 = por %p154, %p155
      %p157 = scmp.ne.s32.totalorder %s146, %s147
      %p158 = scmp.eq.s32.totalorder %s28, 0
      %p159 = por %p157, %p158
      %p160 = scmp.ne.s32.totalorder %s146, %s147
      %p161 = scmp.eq.s32.totalorder %s29, 1
      %p162 = por %p160, %p161
      %p164 = scmp.ne.s32.totalorder %s147, %s163
      %p165 = scmp.eq.s32.totalorder %s29, 0
      %p166 = por %p164, %p165
      %s167 = ssub.s32 %s23, %s30
      %p168 = scmp.eq.s32.totalorder %s167, 0
      %s170 = sadd.s32 %s169, 1
      %s171 = scalar_select %p168, %s169, %s170
      %p174 = pneg %p168
      %p175 = scmp.eq.s32.totalorder %s23, 1
      %p176 = por %p174, %p175
      %p177 = scmp.ne.s32.totalorder %s169, %s172
      %p178 = scmp.eq.s32.totalorder %s23, 0
      %p179 = por %p177, %p178
      %p180 = scmp.ne.s32.totalorder %s169, %s172
      %p181 = scmp.eq.s32.totalorder %s28, 1
      %p182 = por %p180, %p181
      %p183 = scmp.ne.s32.totalorder %s172, %s173
      %p184 = scmp.eq.s32.totalorder %s28, 0
      %p185 = por %p183, %p184
      %p186 = scmp.ne.s32.totalorder %s172, %s173
      %p187 = scmp.eq.s32.totalorder %s29, 1
      %p188 = por %p186, %p187
      %p190 = scmp.ne.s32.totalorder %s173, %s189
      %p191 = scmp.eq.s32.totalorder %s29, 0
      %p192 = por %p190, %p191
      %p193 = scmp.le.s32.totalorder 1, %s23
      %p194 = scmp.lt.s32.totalorder %s23, 3
      %p195 = pnand %p193, %p194
      %p196 = pneg %p195
      // Predicated region
      $region9: #{tpu_custom_call.1} parent=5 // pred_check
        _
      $region10: #{tpu_custom_call.1} parent=5 // pred_check_branch
        %198 = sbr.rel (%p195) target = $region12
      $region11: #{tpu_custom_call.1} parent=5 // pred_region
        %s199 = ssub.s32 %s23, 1
        // Predicated region
        $region13: #{tpu_custom_call.1} parent=11 // pred_check
          %p200 = pneg %p70
        $region14: #{tpu_custom_call.1} parent=11 // pred_check_branch
          %202 = sbr.rel (%p200) target = $region16
        $region15: #{tpu_custom_call.1} parent=11 // pred_region
          %s204 = ssub.s32 2560, 2560
          %205 = vsyncadd [#allocation7], %s204
          %s206 = sshll.u32 [#allocation6], 4
          %s207 = int_to_ptr.vmem [resolvable:$true] %s206
          %212 = dma.hbm_to_vmem [thread:$0]  %s1, 2560, %s207, [#allocation7], 128, 128, 8
        $region16: #{tpu_custom_call.1} parent=11 // pred_fallthru
          _
        // Predicated region
        $region17: #{tpu_custom_call.1} parent=11 // pred_check
          %p213 = pneg %p91
        $region18: #{tpu_custom_call.1} parent=11 // pred_check_branch
          %215 = sbr.rel (%p213) target = $region20
        $region19: #{tpu_custom_call.1} parent=11 // pred_region
          _
        $region20: #{tpu_custom_call.1} parent=11 // pred_fallthru
          _
        // Predicated region
        $region21: #{tpu_custom_call.1} parent=11 // pred_check
          %p216 = pneg %p112
        $region22: #{tpu_custom_call.1} parent=11 // pred_check_branch
          %218 = sbr.rel (%p216) target = $region24
        $region23: #{tpu_custom_call.1} parent=11 // pred_region
          %s220 = ssub.s32 2560, 2560
          %221 = vsyncadd [#allocation7], %s220
          %s222 = sshll.u32 [#allocation8], 4
          %s223 = int_to_ptr.vmem [resolvable:$true] %s222
          %228 = dma.hbm_to_vmem [thread:$0]  %s3, 2560, %s223, [#allocation7], 128, 128, 8
        $region24: #{tpu_custom_call.1} parent=11 // pred_fallthru
          _
        // Predicated region
        $region25: #{tpu_custom_call.1} parent=11 // pred_check
          %p229 = pneg %p133
        $region26: #{tpu_custom_call.1} parent=11 // pred_check_branch
          %231 = sbr.rel (%p229) target = $region28
        $region27: #{tpu_custom_call.1} parent=11 // pred_region
          _
        $region28: #{tpu_custom_call.1} parent=11 // pred_fallthru
          _
      $region12: #{tpu_custom_call.1} parent=5 // pred_fallthru
        _
      %p232 = scmp.lt.s32.totalorder %s23, 2
      // Predicated region
      $region29: #{tpu_custom_call.1} parent=5 // pred_check
        %p233 = pneg %p232
      $region30: #{tpu_custom_call.1} parent=5 // pred_check_branch
        %235 = sbr.rel (%p233) target = $region32
      $region31: #{tpu_custom_call.1} parent=5 // pred_region
        // Predicated region
        $region33: #{tpu_custom_call.1} parent=31 // pred_check
          %p236 = pneg %p43
        $region34: #{tpu_custom_call.1} parent=31 // pred_check_branch
          %238 = sbr.rel (%p236) target = $region36
        $region35: #{tpu_custom_call.1} parent=31 // pred_region
          %s239 = sand.u32 %s33, 1
          %s240 = scalar_lea.sflag [#allocation4], %s239
          %s241 = sand.u32 %s33, 1
          %s242 = smul.addr %s241, 8
          %s243 = scalar_lea.vmem [#allocation3], %s242
          %s245 = ssub.s32 128, 128
          %246 = vsyncadd %s240, %s245
          %s247 = smul.addr %s23, 128
          %s248 = scalar_lea.hbm %s0, %s247
          %s250 = sshll.u32 %s243, 4
          %s251 = int_to_ptr.vmem [resolvable:$true] %s250
          %253 = dma.hbm_to_vmem [thread:$0]  %s248, 128, %s251, %s240
        $region36: #{tpu_custom_call.1} parent=31 // pred_fallthru
          _
      $region32: #{tpu_custom_call.1} parent=5 // pred_fallthru
        _
      %p254 = scmp.le.s32.totalorder 1, %s23
      %p255 = scmp.lt.s32.totalorder %s23, 3
      %p256 = pnand %p254, %p255
      %p257 = pneg %p256
      // Predicated region
      $region37: #{tpu_custom_call.1} parent=5 // pred_check
        _
      $region38: #{tpu_custom_call.1} parent=5 // pred_check_branch
        %259 = sbr.rel (%p256) target = $region40
      $region39: #{tpu_custom_call.1} parent=5 // pred_region
        %s260 = ssub.s32 %s23, 1
        %s261 = sand.u32 %s36, 1
        %s262 = scalar_lea.sflag [#allocation4], %s261
        %s263 = sand.u32 %s36, 1
        %s264 = smul.addr %s263, 8
        %s265 = scalar_lea.vmem [#allocation3], %s264
        // Predicated region
        $region41: #{tpu_custom_call.1} parent=39 // pred_check
          %p266 = pneg %p49
        $region42: #{tpu_custom_call.1} parent=39 // pred_check_branch
          %268 = sbr.rel (%p266) target = $region44
        $region43: #{tpu_custom_call.1} parent=39 // pred_region
          %269 = dma.done %s262, 128
        $region44: #{tpu_custom_call.1} parent=39 // pred_fallthru
          _
        // Predicated region
        $region45: #{tpu_custom_call.1} parent=39 // pred_check
          %p270 = pneg %p70
        $region46: #{tpu_custom_call.1} parent=39 // pred_check_branch
          %272 = sbr.rel (%p270) target = $region48
        $region47: #{tpu_custom_call.1} parent=39 // pred_region
          %273 = dma.done [#allocation7], 2560
        $region48: #{tpu_custom_call.1} parent=39 // pred_fallthru
          _
        // Predicated region
        $region49: #{tpu_custom_call.1} parent=39 // pred_check
          %p274 = pneg %p112
        $region50: #{tpu_custom_call.1} parent=39 // pred_check_branch
          %276 = sbr.rel (%p274) target = $region52
        $region51: #{tpu_custom_call.1} parent=39 // pred_region
          %277 = dma.done [#allocation7], 2560
        $region52: #{tpu_custom_call.1} parent=39 // pred_fallthru
          _
        %s278 = sand.u32 %s36, 1
        %s279 = scalar_lea.sflag [#allocation4], %s278
        %s280 = sand.u32 %s36, 1
        %s281 = smul.addr %s280, 8
        %s282 = scalar_lea.vmem [#allocation3], %s281
        %p283 = pneg %p49
        %p284 = pneg %p46
        %p285 = pneg %p70
        %p286 = pneg %p67
        %p287 = pneg %p91
        %p288 = pneg %p88
        %p289 = pneg %p112
        %p290 = pneg %p109
        %p291 = pneg %p133
        %p292 = pneg %p130
        %p293 = pneg %p159
        %p294 = pneg %p156
        %s295 = sand.u32 %s146, 1
        %s296 = scalar_lea.sflag [#allocation5], %s295
        %s297 = sand.u32 %s146, 1
        %s298 = smul.addr %s297, 8
        %s299 = scalar_lea.vmem [#allocation9], %s298
        %p300 = pneg %p185
        %p301 = pneg %p182
        %s302 = sand.u32 %s172, 1
        %s303 = scalar_lea.sflag [#allocation11], %s302
        %s304 = sand.u32 %s172, 1
        %s305 = smul.addr %s304, 8
        %s306 = scalar_lea.vmem [#allocation10], %s305
        %vm307 = vcmask 261120
        %308 = vst.msk [vmem:[#allocation2] sm:$0xff] %vm307, 0.0
        %vm309 = vcmask 254976
        %310 = vst.msk [vmem:[#allocation2 + $0x10] sm:$0x3] %vm309, 0.0
        %v311 = vld [vmem:[%s265] sm:$0xff]
        %312 = vst.msk [vmem:[#allocation2 + $0x8] sm:$0xff] %vm307, %v311
        %v313 = vld [vmem:[#allocation2 + $0x6] sm:$0xff]
        %v314 = vld [vmem:[#allocation6] sm:$0xff]
        %v315 = vld [vmem:[#allocation6 + $0x8] sm:$0xff]
        %v316 = vld [vmem:[#allocation6 + $0x10] sm:$0xff]
        %v317 = vld [vmem:[#allocation6 + $0x18] sm:$0xff]
        %v318 = vld [vmem:[#allocation2 + $0x7] sm:$0xff]
        %s319 = scalar_lea.vmem [#allocation6], 32
        %v320 = vld [vmem:[%s319] sm:$0xff]
        %v321 = vld [vmem:[%s319 + $0x8] sm:$0xff]
        %v322 = vld [vmem:[%s319 + $0x10] sm:$0xff]
        %v323 = vld [vmem:[%s319 + $0x18] sm:$0xff]
        %v325 = vsel %vm307, %v318, 0
        %327 = vmatprep.subr.mxu0 0.0
        %328 = vmatpush1.msra.mxu0 %v320
        %329 = vmatprep.subr.mxu0 0.0
        %330 = vmatpush1.msra.mxu0 %v321
        %331 = vmatprep.subr.mxu0 0.0
        %332 = vmatpush1.msra.mxu0 %v322
        %333 = vmatprep.subr.mxu0 0.0
        %334 = vmatpush1.msra.mxu0 %v323
        %335 = vmatprep.subr.mxu0 0.0
        %336 = vmatpush1.msra.mxu0 0.0
        %337 = vmatprep.subr.mxu0 0.0
        %338 = vmatpush1.msra.mxu0 0.0
        %339 = vmatprep.subr.mxu0 0.0
        %340 = vmatpush1.msra.mxu0 0.0
        %341 = vmatprep.subr.mxu0 0.0
        %342 = vmatpush1.msra.mxu0 0.0
        %343 = vmatprep.subr.mxu0 0.0
        %344 = vmatpush1.msra.mxu0 0.0
        %345 = vmatprep.subr.mxu0 0.0
        %346 = vmatpush1.msra.mxu0 0.0
        %347 = vmatprep.subr.mxu0 0.0
        %348 = vmatpush1.msra.mxu0 0.0
        %349 = vmatprep.subr.mxu0 0.0
        %350 = vmatpush1.msra.mxu0 0.0
        %351 = vmatprep.subr.mxu0 0.0
        %352 = vmatpush1.msra.mxu0 0.0
        %353 = vmatprep.subr.mxu0 0.0
        %354 = vmatpush1.msra.mxu0 0.0
        %355 = vmatprep.subr.mxu0 0.0
        %356 = vmatpush1.msra.mxu0 0.0
        %357 = vmatprep.subr.mxu0 0.0
        %358 = vmatpush1.msra.mxu0 0.0
        %359 = vmatprep.subr.mxu0 0.0
        %360 = vmatpush1.msra.mxu0 0.0
        %361 = vmatprep.subr.mxu0 0.0
        %362 = vmatpush1.msra.mxu0 0.0
        %363 = vmatprep.subr.mxu0 0.0
        %364 = vmatpush1.msra.mxu0 0.0
        %365 = vmatprep.subr.mxu0 0.0
        %366 = vmatpush1.msra.mxu0 0.0
        %367 = vmatprep.subr.mxu0 0.0
        %368 = vmatpush1.msra.mxu0 0.0
        %369 = vmatprep.subr.mxu0 0.0
        %370 = vmatpush1.msra.mxu0 0.0
        %371 = vmatprep.subr.mxu0 0.0
        %372 = vmatpush1.msra.mxu0 0.0
        %373 = vmatprep.subr.mxu0 0.0
        %374 = vmatpush1.msra.mxu0 0.0
        %375 = vmatprep.subr.mxu0 0.0
        %376 = vmatpush1.msra.mxu0 0.0
        %377 = vmatprep.subr.mxu0 0.0
        %378 = vmatpush1.msra.mxu0 0.0
        %379 = vmatprep.subr.mxu0 0.0
        %380 = vmatpush1.msra.mxu0 0.0
        %381 = vmatprep.subr.mxu0 0.0
        %382 = vmatpush1.msra.mxu0 0.0
        %383 = vmatprep.subr.mxu0 0.0
        %384 = vmatpush1.msra.mxu0 0.0
        %385 = vmatprep.subr.mxu0 0.0
        %386 = vmatpush1.msra.mxu0 0.0
        %387 = vmatprep.subr.mxu0 0.0
        %388 = vmatpush1.msra.mxu0 0.0
        %389 = vmatprep.subr.mxu0 0.0
        %390 = vmatpush1.msra.mxu0 0.0
        %391 = vmatprep.mubr.f32.mxu0 0.0
        %392 = vmatmul.mubr.f32.gmra.mrb[0].mxu0 %v325
        %v393 = vpop.f32.mrb[0].mxu0
        %v394 = vadd.f32 0.0, %v393
        %v395 = vpop.f32.mrb[0].mxu0
        %396 = vdwg.mxu0
        %v398 = vsel %vm307, %v313, 0
        %400 = vmatprep.subr.mxu0 0.0
        %401 = vmatpush1.msra.mxu0 %v314
        %402 = vmatprep.subr.mxu0 0.0
        %403 = vmatpush1.msra.mxu0 %v315
        %404 = vmatprep.subr.mxu0 0.0
        %405 = vmatpush1.msra.mxu0 %v316
        %406 = vmatprep.subr.mxu0 0.0
        %407 = vmatpush1.msra.mxu0 %v317
        %408 = vmatprep.subr.mxu0 0.0
        %409 = vmatpush1.msra.mxu0 0.0
        %410 = vmatprep.subr.mxu0 0.0
        %411 = vmatpush1.msra.mxu0 0.0
        %412 = vmatprep.subr.mxu0 0.0
        %413 = vmatpush1.msra.mxu0 0.0
        %414 = vmatprep.subr.mxu0 0.0
        %415 = vmatpush1.msra.mxu0 0.0
        %416 = vmatprep.subr.mxu0 0.0
        %417 = vmatpush1.msra.mxu0 0.0
        %418 = vmatprep.subr.mxu0 0.0
        %419 = vmatpush1.msra.mxu0 0.0
        %420 = vmatprep.subr.mxu0 0.0
        %421 = vmatpush1.msra.mxu0 0.0
        %422 = vmatprep.subr.mxu0 0.0
        %423 = vmatpush1.msra.mxu0 0.0
        %424 = vmatprep.subr.mxu0 0.0
        %425 = vmatpush1.msra.mxu0 0.0
        %426 = vmatprep.subr.mxu0 0.0
        %427 = vmatpush1.msra.mxu0 0.0
        %428 = vmatprep.subr.mxu0 0.0
        %429 = vmatpush1.msra.mxu0 0.0
        %430 = vmatprep.subr.mxu0 0.0
        %431 = vmatpush1.msra.mxu0 0.0
        %432 = vmatprep.subr.mxu0 0.0
        %433 = vmatpush1.msra.mxu0 0.0
        %434 = vmatprep.subr.mxu0 0.0
        %435 = vmatpush1.msra.mxu0 0.0
        %436 = vmatprep.subr.mxu0 0.0
        %437 = vmatpush1.msra.mxu0 0.0
        %438 = vmatprep.subr.mxu0 0.0
        %439 = vmatpush1.msra.mxu0 0.0
        %440 = vmatprep.subr.mxu0 0.0
        %441 = vmatpush1.msra.mxu0 0.0
        %442 = vmatprep.subr.mxu0 0.0
        %443 = vmatpush1.msra.mxu0 0.0
        %444 = vmatprep.subr.mxu0 0.0
        %445 = vmatpush1.msra.mxu0 0.0
        %446 = vmatprep.subr.mxu0 0.0
        %447 = vmatpush1.msra.mxu0 0.0
        %448 = vmatprep.subr.mxu0 0.0
        %449 = vmatpush1.msra.mxu0 0.0
        %450 = vmatprep.subr.mxu0 0.0
        %451 = vmatpush1.msra.mxu0 0.0
        %452 = vmatprep.subr.mxu0 0.0
        %453 = vmatpush1.msra.mxu0 0.0
        %454 = vmatprep.subr.mxu0 0.0
        %455 = vmatpush1.msra.mxu0 0.0
        %456 = vmatprep.subr.mxu0 0.0
        %457 = vmatpush1.msra.mxu0 0.0
        %458 = vmatprep.subr.mxu0 0.0
        %459 = vmatpush1.msra.mxu0 0.0
        %460 = vmatprep.subr.mxu0 0.0
        %461 = vmatpush1.msra.mxu0 0.0
        %462 = vmatprep.subr.mxu0 0.0
        %463 = vmatpush1.msra.mxu0 0.0
        %464 = vmatprep.mubr.f32.mxu0 0.0
        %465 = vmatmul.mubr.f32.gmra.mrb[0].mxu0 %v398
        %v466 = vpop.f32.mrb[0].mxu0
        %v467 = vadd.f32 %v394, %v466
        %v468 = vpop.f32.mrb[0].mxu0
        %469 = vdwg.mxu0
        %v470 = vld [vmem:[#allocation2 + $0x8] sm:$0xff]
        %s471 = scalar_lea.vmem [#allocation6], 64
        %v472 = vld [vmem:[%s471] sm:$0xff]
        %v473 = vld [vmem:[%s471 + $0x8] sm:$0xff]
        %v474 = vld [vmem:[%s471 + $0x10] sm:$0xff]
        %v475 = vld [vmem:[%s471 + $0x18] sm:$0xff]
        %v477 = vsel %vm307, %v470, 0
        %479 = vmatprep.subr.mxu0 0.0
        %480 = vmatpush1.msra.mxu0 %v472
        %481 = vmatprep.subr.mxu0 0.0
        %482 = vmatpush1.msra.mxu0 %v473
        %483 = vmatprep.subr.mxu0 0.0
        %484 = vmatpush1.msra.mxu0 %v474
        %485 = vmatprep.subr.mxu0 0.0
        %486 = vmatpush1.msra.mxu0 %v475
        %487 = vmatprep.subr.mxu0 0.0
        %488 = vmatpush1.msra.mxu0 0.0
        %489 = vmatprep.subr.mxu0 0.0
        %490 = vmatpush1.msra.mxu0 0.0
        %491 = vmatprep.subr.mxu0 0.0
        %492 = vmatpush1.msra.mxu0 0.0
        %493 = vmatprep.subr.mxu0 0.0
        %494 = vmatpush1.msra.mxu0 0.0
        %495 = vmatprep.subr.mxu0 0.0
        %496 = vmatpush1.msra.mxu0 0.0
        %497 = vmatprep.subr.mxu0 0.0
        %498 = vmatpush1.msra.mxu0 0.0
        %499 = vmatprep.subr.mxu0 0.0
        %500 = vmatpush1.msra.mxu0 0.0
        %501 = vmatprep.subr.mxu0 0.0
        %502 = vmatpush1.msra.mxu0 0.0
        %503 = vmatprep.subr.mxu0 0.0
        %504 = vmatpush1.msra.mxu0 0.0
        %505 = vmatprep.subr.mxu0 0.0
        %506 = vmatpush1.msra.mxu0 0.0
        %507 = vmatprep.subr.mxu0 0.0
        %508 = vmatpush1.msra.mxu0 0.0
        %509 = vmatprep.subr.mxu0 0.0
        %510 = vmatpush1.msra.mxu0 0.0
        %511 = vmatprep.subr.mxu0 0.0
        %512 = vmatpush1.msra.mxu0 0.0
        %513 = vmatprep.subr.mxu0 0.0
        %514 = vmatpush1.msra.mxu0 0.0
        %515 = vmatprep.subr.mxu0 0.0
        %516 = vmatpush1.msra.mxu0 0.0
        %517 = vmatprep.subr.mxu0 0.0
        %518 = vmatpush1.msra.mxu0 0.0
        %519 = vmatprep.subr.mxu0 0.0
        %520 = vmatpush1.msra.mxu0 0.0
        %521 = vmatprep.subr.mxu0 0.0
        %522 = vmatpush1.msra.mxu0 0.0
        %523 = vmatprep.subr.mxu0 0.0
        %524 = vmatpush1.msra.mxu0 0.0
        %525 = vmatprep.subr.mxu0 0.0
        %526 = vmatpush1.msra.mxu0 0.0
        %527 = vmatprep.subr.mxu0 0.0
        %528 = vmatpush1.msra.mxu0 0.0
        %529 = vmatprep.subr.mxu0 0.0
        %530 = vmatpush1.msra.mxu0 0.0
        %531 = vmatprep.subr.mxu0 0.0
        %532 = vmatpush1.msra.mxu0 0.0
        %533 = vmatprep.subr.mxu0 0.0
        %534 = vmatpush1.msra.mxu0 0.0
        %535 = vmatprep.subr.mxu0 0.0
        %536 = vmatpush1.msra.mxu0 0.0
        %537 = vmatprep.subr.mxu0 0.0
        %538 = vmatpush1.msra.mxu0 0.0
        %539 = vmatprep.subr.mxu0 0.0
        %540 = vmatpush1.msra.mxu0 0.0
        %541 = vmatprep.subr.mxu0 0.0
        %542 = vmatpush1.msra.mxu0 0.0
        %543 = vmatprep.mubr.f32.mxu0 0.0
        %544 = vmatmul.mubr.f32.gmra.mrb[0].mxu0 %v477
        %v545 = vpop.f32.mrb[0].mxu0
        %v546 = vadd.f32 0.0, %v545
        %v547 = vpop.f32.mrb[0].mxu0
        %548 = vdwg.mxu0
        %v549 = vadd.f32 %v467, %v546
        %v550 = vld [vmem:[#allocation2 + $0x9] sm:$0xff]
        %s551 = scalar_lea.vmem [#allocation6], 96
        %v552 = vld [vmem:[%s551] sm:$0xff]
        %v553 = vld [vmem:[%s551 + $0x8] sm:$0xff]
        %v554 = vld [vmem:[%s551 + $0x10] sm:$0xff]
        %v555 = vld [vmem:[%s551 + $0x18] sm:$0xff]
        %v557 = vsel %vm307, %v550, 0
        %559 = vmatprep.subr.mxu0 0.0
        %560 = vmatpush1.msra.mxu0 %v552
        %561 = vmatprep.subr.mxu0 0.0
        %562 = vmatpush1.msra.mxu0 %v553
        %563 = vmatprep.subr.mxu0 0.0
        %564 = vmatpush1.msra.mxu0 %v554
        %565 = vmatprep.subr.mxu0 0.0
        %566 = vmatpush1.msra.mxu0 %v555
        %567 = vmatprep.subr.mxu0 0.0
        %568 = vmatpush1.msra.mxu0 0.0
        %569 = vmatprep.subr.mxu0 0.0
        %570 = vmatpush1.msra.mxu0 0.0
        %571 = vmatprep.subr.mxu0 0.0
        %572 = vmatpush1.msra.mxu0 0.0
        %573 = vmatprep.subr.mxu0 0.0
        %574 = vmatpush1.msra.mxu0 0.0
        %575 = vmatprep.subr.mxu0 0.0
        %576 = vmatpush1.msra.mxu0 0.0
        %577 = vmatprep.subr.mxu0 0.0
        %578 = vmatpush1.msra.mxu0 0.0
        %579 = vmatprep.subr.mxu0 0.0
        %580 = vmatpush1.msra.mxu0 0.0
        %581 = vmatprep.subr.mxu0 0.0
        %582 = vmatpush1.msra.mxu0 0.0
        %583 = vmatprep.subr.mxu0 0.0
        %584 = vmatpush1.msra.mxu0 0.0
        %585 = vmatprep.subr.mxu0 0.0
        %586 = vmatpush1.msra.mxu0 0.0
        %587 = vmatprep.subr.mxu0 0.0
        %588 = vmatpush1.msra.mxu0 0.0
        %589 = vmatprep.subr.mxu0 0.0
        %590 = vmatpush1.msra.mxu0 0.0
        %591 = vmatprep.subr.mxu0 0.0
        %592 = vmatpush1.msra.mxu0 0.0
        %593 = vmatprep.subr.mxu0 0.0
        %594 = vmatpush1.msra.mxu0 0.0
        %595 = vmatprep.subr.mxu0 0.0
        %596 = vmatpush1.msra.mxu0 0.0
        %597 = vmatprep.subr.mxu0 0.0
        %598 = vmatpush1.msra.mxu0 0.0
        %599 = vmatprep.subr.mxu0 0.0
        %600 = vmatpush1.msra.mxu0 0.0
        %601 = vmatprep.subr.mxu0 0.0
        %602 = vmatpush1.msra.mxu0 0.0
        %603 = vmatprep.subr.mxu0 0.0
        %604 = vmatpush1.msra.mxu0 0.0
        %605 = vmatprep.subr.mxu0 0.0
        %606 = vmatpush1.msra.mxu0 0.0
        %607 = vmatprep.subr.mxu0 0.0
        %608 = vmatpush1.msra.mxu0 0.0
        %609 = vmatprep.subr.mxu0 0.0
        %610 = vmatpush1.msra.mxu0 0.0
        %611 = vmatprep.subr.mxu0 0.0
        %612 = vmatpush1.msra.mxu0 0.0
        %613 = vmatprep.subr.mxu0 0.0
        %614 = vmatpush1.msra.mxu0 0.0
        %615 = vmatprep.subr.mxu0 0.0
        %616 = vmatpush1.msra.mxu0 0.0
        %617 = vmatprep.subr.mxu0 0.0
        %618 = vmatpush1.msra.mxu0 0.0
        %619 = vmatprep.subr.mxu0 0.0
        %620 = vmatpush1.msra.mxu0 0.0
        %621 = vmatprep.subr.mxu0 0.0
        %622 = vmatpush1.msra.mxu0 0.0
        %623 = vmatprep.mubr.f32.mxu0 0.0
        %624 = vmatmul.mubr.f32.gmra.mrb[0].mxu0 %v557
        %v625 = vpop.f32.mrb[0].mxu0
        %v626 = vadd.f32 0.0, %v625
        %v627 = vpop.f32.mrb[0].mxu0
        %628 = vdwg.mxu0
        %v629 = vadd.f32 %v549, %v626
        %v630 = vld [vmem:[#allocation2 + $0xa] sm:$0xff]
        %s631 = scalar_lea.vmem [#allocation6], 128
        %v632 = vld [vmem:[%s631] sm:$0xff]
        %v633 = vld [vmem:[%s631 + $0x8] sm:$0xff]
        %v634 = vld [vmem:[%s631 + $0x10] sm:$0xff]
        %v635 = vld [vmem:[%s631 + $0x18] sm:$0xff]
        %v637 = vsel %vm307, %v630, 0
        %639 = vmatprep.subr.mxu0 0.0
        %640 = vmatpush1.msra.mxu0 %v632
        %641 = vmatprep.subr.mxu0 0.0
        %642 = vmatpush1.msra.mxu0 %v633
        %643 = vmatprep.subr.mxu0 0.0
        %644 = vmatpush1.msra.mxu0 %v634
        %645 = vmatprep.subr.mxu0 0.0
        %646 = vmatpush1.msra.mxu0 %v635
        %647 = vmatprep.subr.mxu0 0.0
        %648 = vmatpush1.msra.mxu0 0.0
        %649 = vmatprep.subr.mxu0 0.0
        %650 = vmatpush1.msra.mxu0 0.0
        %651 = vmatprep.subr.mxu0 0.0
        %652 = vmatpush1.msra.mxu0 0.0
        %653 = vmatprep.subr.mxu0 0.0
        %654 = vmatpush1.msra.mxu0 0.0
        %655 = vmatprep.subr.mxu0 0.0
        %656 = vmatpush1.msra.mxu0 0.0
        %657 = vmatprep.subr.mxu0 0.0
        %658 = vmatpush1.msra.mxu0 0.0
        %659 = vmatprep.subr.mxu0 0.0
        %660 = vmatpush1.msra.mxu0 0.0
        %661 = vmatprep.subr.mxu0 0.0
        %662 = vmatpush1.msra.mxu0 0.0
        %663 = vmatprep.subr.mxu0 0.0
        %664 = vmatpush1.msra.mxu0 0.0
        %665 = vmatprep.subr.mxu0 0.0
        %666 = vmatpush1.msra.mxu0 0.0
        %667 = vmatprep.subr.mxu0 0.0
        %668 = vmatpush1.msra.mxu0 0.0
        %669 = vmatprep.subr.mxu0 0.0
        %670 = vmatpush1.msra.mxu0 0.0
        %671 = vmatprep.subr.mxu0 0.0
        %672 = vmatpush1.msra.mxu0 0.0
        %673 = vmatprep.subr.mxu0 0.0
        %674 = vmatpush1.msra.mxu0 0.0
        %675 = vmatprep.subr.mxu0 0.0
        %676 = vmatpush1.msra.mxu0 0.0
        %677 = vmatprep.subr.mxu0 0.0
        %678 = vmatpush1.msra.mxu0 0.0
        %679 = vmatprep.subr.mxu0 0.0
        %680 = vmatpush1.msra.mxu0 0.0
        %681 = vmatprep.subr.mxu0 0.0
        %682 = vmatpush1.msra.mxu0 0.0
        %683 = vmatprep.subr.mxu0 0.0
        %684 = vmatpush1.msra.mxu0 0.0
        %685 = vmatprep.subr.mxu0 0.0
        %686 = vmatpush1.msra.mxu0 0.0
        %687 = vmatprep.subr.mxu0 0.0
        %688 = vmatpush1.msra.mxu0 0.0
        %689 = vmatprep.subr.mxu0 0.0
        %690 = vmatpush1.msra.mxu0 0.0
        %691 = vmatprep.subr.mxu0 0.0
        %692 = vmatpush1.msra.mxu0 0.0
        %693 = vmatprep.subr.mxu0 0.0
        %694 = vmatpush1.msra.mxu0 0.0
        %695 = vmatprep.subr.mxu0 0.0
        %696 = vmatpush1.msra.mxu0 0.0
        %697 = vmatprep.subr.mxu0 0.0
        %698 = vmatpush1.msra.mxu0 0.0
        %699 = vmatprep.subr.mxu0 0.0
        %700 = vmatpush1.msra.mxu0 0.0
        %701 = vmatprep.subr.mxu0 0.0
        %702 = vmatpush1.msra.mxu0 0.0
        %703 = vmatprep.mubr.f32.mxu0 0.0
        %704 = vmatmul.mubr.f32.gmra.mrb[0].mxu0 %v637
        %v705 = vpop.f32.mrb[0].mxu0
        %v706 = vadd.f32 0.0, %v705
        %v707 = vpop.f32.mrb[0].mxu0
        %708 = vdwg.mxu0
        %v709 = vadd.f32 %v629, %v706
        %v710 = vld [vmem:[%s2] sm:$0x1]
        %v712 = vlaneseq
        %v713 = vshrl.u32 %v712, 7
        %v714 = vsub.s32 0, %v713
        %v715 = vrot.slane %v710, %v714
        %v717 = vadd.f32 %v709, %v715
        %v718 = vmax.f32 %v717, 0.0
        %719 = vst.msk [vmem:[#allocation2 + $0x8] sm:$0xff] %vm307, %v718
        %v720 = vld [vmem:[#allocation2 + $0x6] sm:$0xff]
        %v721 = vld [vmem:[#allocation8] sm:$0xff]
        %v722 = vld [vmem:[#allocation8 + $0x8] sm:$0xff]
        %v723 = vld [vmem:[#allocation8 + $0x10] sm:$0xff]
        %v724 = vld [vmem:[#allocation8 + $0x18] sm:$0xff]
        %v725 = vld [vmem:[#allocation2 + $0x7] sm:$0xff]
        %s726 = scalar_lea.vmem [#allocation8], 32
        %v727 = vld [vmem:[%s726] sm:$0xff]
        %v728 = vld [vmem:[%s726 + $0x8] sm:$0xff]
        %v729 = vld [vmem:[%s726 + $0x10] sm:$0xff]
        %v730 = vld [vmem:[%s726 + $0x18] sm:$0xff]
        %v732 = vsel %vm307, %v725, 0
        %734 = vmatprep.subr.mxu0 0.0
        %735 = vmatpush1.msra.mxu0 %v727
        %736 = vmatprep.subr.mxu0 0.0
        %737 = vmatpush1.msra.mxu0 %v728
        %738 = vmatprep.subr.mxu0 0.0
        %739 = vmatpush1.msra.mxu0 %v729
        %740 = vmatprep.subr.mxu0 0.0
        %741 = vmatpush1.msra.mxu0 %v730
        %742 = vmatprep.subr.mxu0 0.0
        %743 = vmatpush1.msra.mxu0 0.0
        %744 = vmatprep.subr.mxu0 0.0
        %745 = vmatpush1.msra.mxu0 0.0
        %746 = vmatprep.subr.mxu0 0.0
        %747 = vmatpush1.msra.mxu0 0.0
        %748 = vmatprep.subr.mxu0 0.0
        %749 = vmatpush1.msra.mxu0 0.0
        %750 = vmatprep.subr.mxu0 0.0
        %751 = vmatpush1.msra.mxu0 0.0
        %752 = vmatprep.subr.mxu0 0.0
        %753 = vmatpush1.msra.mxu0 0.0
        %754 = vmatprep.subr.mxu0 0.0
        %755 = vmatpush1.msra.mxu0 0.0
        %756 = vmatprep.subr.mxu0 0.0
        %757 = vmatpush1.msra.mxu0 0.0
        %758 = vmatprep.subr.mxu0 0.0
        %759 = vmatpush1.msra.mxu0 0.0
        %760 = vmatprep.subr.mxu0 0.0
        %761 = vmatpush1.msra.mxu0 0.0
        %762 = vmatprep.subr.mxu0 0.0
        %763 = vmatpush1.msra.mxu0 0.0
        %764 = vmatprep.subr.mxu0 0.0
        %765 = vmatpush1.msra.mxu0 0.0
        %766 = vmatprep.subr.mxu0 0.0
        %767 = vmatpush1.msra.mxu0 0.0
        %768 = vmatprep.subr.mxu0 0.0
        %769 = vmatpush1.msra.mxu0 0.0
        %770 = vmatprep.subr.mxu0 0.0
        %771 = vmatpush1.msra.mxu0 0.0
        %772 = vmatprep.subr.mxu0 0.0
        %773 = vmatpush1.msra.mxu0 0.0
        %774 = vmatprep.subr.mxu0 0.0
        %775 = vmatpush1.msra.mxu0 0.0
        %776 = vmatprep.subr.mxu0 0.0
        %777 = vmatpush1.msra.mxu0 0.0
        %778 = vmatprep.subr.mxu0 0.0
        %779 = vmatpush1.msra.mxu0 0.0
        %780 = vmatprep.subr.mxu0 0.0
        %781 = vmatpush1.msra.mxu0 0.0
        %782 = vmatprep.subr.mxu0 0.0
        %783 = vmatpush1.msra.mxu0 0.0
        %784 = vmatprep.subr.mxu0 0.0
        %785 = vmatpush1.msra.mxu0 0.0
        %786 = vmatprep.subr.mxu0 0.0
        %787 = vmatpush1.msra.mxu0 0.0
        %788 = vmatprep.subr.mxu0 0.0
        %789 = vmatpush1.msra.mxu0 0.0
        %790 = vmatprep.subr.mxu0 0.0
        %791 = vmatpush1.msra.mxu0 0.0
        %792 = vmatprep.subr.mxu0 0.0
        %793 = vmatpush1.msra.mxu0 0.0
        %794 = vmatprep.subr.mxu0 0.0
        %795 = vmatpush1.msra.mxu0 0.0
        %796 = vmatprep.subr.mxu0 0.0
        %797 = vmatpush1.msra.mxu0 0.0
        %798 = vmatprep.mubr.f32.mxu0 0.0
        %799 = vmatmul.mubr.f32.gmra.mrb[0].mxu0 %v732
        %v800 = vpop.f32.mrb[0].mxu0
        %v801 = vadd.f32 0.0, %v800
        %v802 = vpop.f32.mrb[0].mxu0
        %803 = vdwg.mxu0
        %v805 = vsel %vm307, %v720, 0
        %807 = vmatprep.subr.mxu0 0.0
        %808 = vmatpush1.msra.mxu0 %v721
        %809 = vmatprep.subr.mxu0 0.0
        %810 = vmatpush1.msra.mxu0 %v722
        %811 = vmatprep.subr.mxu0 0.0
        %812 = vmatpush1.msra.mxu0 %v723
        %813 = vmatprep.subr.mxu0 0.0
        %814 = vmatpush1.msra.mxu0 %v724
        %815 = vmatprep.subr.mxu0 0.0
        %816 = vmatpush1.msra.mxu0 0.0
        %817 = vmatprep.subr.mxu0 0.0
        %818 = vmatpush1.msra.mxu0 0.0
        %819 = vmatprep.subr.mxu0 0.0
        %820 = vmatpush1.msra.mxu0 0.0
        %821 = vmatprep.subr.mxu0 0.0
        %822 = vmatpush1.msra.mxu0 0.0
        %823 = vmatprep.subr.mxu0 0.0
        %824 = vmatpush1.msra.mxu0 0.0
        %825 = vmatprep.subr.mxu0 0.0
        %826 = vmatpush1.msra.mxu0 0.0
        %827 = vmatprep.subr.mxu0 0.0
        %828 = vmatpush1.msra.mxu0 0.0
        %829 = vmatprep.subr.mxu0 0.0
        %830 = vmatpush1.msra.mxu0 0.0
        %831 = vmatprep.subr.mxu0 0.0
        %832 = vmatpush1.msra.mxu0 0.0
        %833 = vmatprep.subr.mxu0 0.0
        %834 = vmatpush1.msra.mxu0 0.0
        %835 = vmatprep.subr.mxu0 0.0
        %836 = vmatpush1.msra.mxu0 0.0
        %837 = vmatprep.subr.mxu0 0.0
        %838 = vmatpush1.msra.mxu0 0.0
        %839 = vmatprep.subr.mxu0 0.0
        %840 = vmatpush1.msra.mxu0 0.0
        %841 = vmatprep.subr.mxu0 0.0
        %842 = vmatpush1.msra.mxu0 0.0
        %843 = vmatprep.subr.mxu0 0.0
        %844 = vmatpush1.msra.mxu0 0.0
        %845 = vmatprep.subr.mxu0 0.0
        %846 = vmatpush1.msra.mxu0 0.0
        %847 = vmatprep.subr.mxu0 0.0
        %848 = vmatpush1.msra.mxu0 0.0
        %849 = vmatprep.subr.mxu0 0.0
        %850 = vmatpush1.msra.mxu0 0.0
        %851 = vmatprep.subr.mxu0 0.0
        %852 = vmatpush1.msra.mxu0 0.0
        %853 = vmatprep.subr.mxu0 0.0
        %854 = vmatpush1.msra.mxu0 0.0
        %855 = vmatprep.subr.mxu0 0.0
        %856 = vmatpush1.msra.mxu0 0.0
        %857 = vmatprep.subr.mxu0 0.0
        %858 = vmatpush1.msra.mxu0 0.0
        %859 = vmatprep.subr.mxu0 0.0
        %860 = vmatpush1.msra.mxu0 0.0
        %861 = vmatprep.subr.mxu0 0.0
        %862 = vmatpush1.msra.mxu0 0.0
        %863 = vmatprep.subr.mxu0 0.0
        %864 = vmatpush1.msra.mxu0 0.0
        %865 = vmatprep.subr.mxu0 0.0
        %866 = vmatpush1.msra.mxu0 0.0
        %867 = vmatprep.subr.mxu0 0.0
        %868 = vmatpush1.msra.mxu0 0.0
        %869 = vmatprep.subr.mxu0 0.0
        %870 = vmatpush1.msra.mxu0 0.0
        %871 = vmatprep.mubr.f32.mxu0 0.0
        %872 = vmatmul.mubr.f32.gmra.mrb[0].mxu0 %v805
        %v873 = vpop.f32.mrb[0].mxu0
        %v874 = vadd.f32 %v801, %v873
        %v875 = vpop.f32.mrb[0].mxu0
        %876 = vdwg.mxu0
        %v877 = vld [vmem:[#allocation2 + $0x8] sm:$0xff]
        %s878 = scalar_lea.vmem [#allocation8], 64
        %v879 = vld [vmem:[%s878] sm:$0xff]
        %v880 = vld [vmem:[%s878 + $0x8] sm:$0xff]
        %v881 = vld [vmem:[%s878 + $0x10] sm:$0xff]
        %v882 = vld [vmem:[%s878 + $0x18] sm:$0xff]
        %v884 = vsel %vm307, %v877, 0
        %886 = vmatprep.subr.mxu0 0.0
        %887 = vmatpush1.msra.mxu0 %v879
        %888 = vmatprep.subr.mxu0 0.0
        %889 = vmatpush1.msra.mxu0 %v880
        %890 = vmatprep.subr.mxu0 0.0
        %891 = vmatpush1.msra.mxu0 %v881
        %892 = vmatprep.subr.mxu0 0.0
        %893 = vmatpush1.msra.mxu0 %v882
        %894 = vmatprep.subr.mxu0 0.0
        %895 = vmatpush1.msra.mxu0 0.0
        %896 = vmatprep.subr.mxu0 0.0
        %897 = vmatpush1.msra.mxu0 0.0
        %898 = vmatprep.subr.mxu0 0.0
        %899 = vmatpush1.msra.mxu0 0.0
        %900 = vmatprep.subr.mxu0 0.0
        %901 = vmatpush1.msra.mxu0 0.0
        %902 = vmatprep.subr.mxu0 0.0
        %903 = vmatpush1.msra.mxu0 0.0
        %904 = vmatprep.subr.mxu0 0.0
        %905 = vmatpush1.msra.mxu0 0.0
        %906 = vmatprep.subr.mxu0 0.0
        %907 = vmatpush1.msra.mxu0 0.0
        %908 = vmatprep.subr.mxu0 0.0
        %909 = vmatpush1.msra.mxu0 0.0
        %910 = vmatprep.subr.mxu0 0.0
        %911 = vmatpush1.msra.mxu0 0.0
        %912 = vmatprep.subr.mxu0 0.0
        %913 = vmatpush1.msra.mxu0 0.0
        %914 = vmatprep.subr.mxu0 0.0
        %915 = vmatpush1.msra.mxu0 0.0
        %916 = vmatprep.subr.mxu0 0.0
        %917 = vmatpush1.msra.mxu0 0.0
        %918 = vmatprep.subr.mxu0 0.0
        %919 = vmatpush1.msra.mxu0 0.0
        %920 = vmatprep.subr.mxu0 0.0
        %921 = vmatpush1.msra.mxu0 0.0
        %922 = vmatprep.subr.mxu0 0.0
        %923 = vmatpush1.msra.mxu0 0.0
        %924 = vmatprep.subr.mxu0 0.0
        %925 = vmatpush1.msra.mxu0 0.0
        %926 = vmatprep.subr.mxu0 0.0
        %927 = vmatpush1.msra.mxu0 0.0
        %928 = vmatprep.subr.mxu0 0.0
        %929 = vmatpush1.msra.mxu0 0.0
        %930 = vmatprep.subr.mxu0 0.0
        %931 = vmatpush1.msra.mxu0 0.0
        %932 = vmatprep.subr.mxu0 0.0
        %933 = vmatpush1.msra.mxu0 0.0
        %934 = vmatprep.subr.mxu0 0.0
        %935 = vmatpush1.msra.mxu0 0.0
        %936 = vmatprep.subr.mxu0 0.0
        %937 = vmatpush1.msra.mxu0 0.0
        %938 = vmatprep.subr.mxu0 0.0
        %939 = vmatpush1.msra.mxu0 0.0
        %940 = vmatprep.subr.mxu0 0.0
        %941 = vmatpush1.msra.mxu0 0.0
        %942 = vmatprep.subr.mxu0 0.0
        %943 = vmatpush1.msra.mxu0 0.0
        %944 = vmatprep.subr.mxu0 0.0
        %945 = vmatpush1.msra.mxu0 0.0
        %946 = vmatprep.subr.mxu0 0.0
        %947 = vmatpush1.msra.mxu0 0.0
        %948 = vmatprep.subr.mxu0 0.0
        %949 = vmatpush1.msra.mxu0 0.0
        %950 = vmatprep.mubr.f32.mxu0 0.0
        %951 = vmatmul.mubr.f32.gmra.mrb[0].mxu0 %v884
        %v952 = vpop.f32.mrb[0].mxu0
        %v953 = vadd.f32 0.0, %v952
        %v954 = vpop.f32.mrb[0].mxu0
        %955 = vdwg.mxu0
        %v956 = vadd.f32 %v874, %v953
        %v957 = vld [vmem:[#allocation2 + $0x9] sm:$0xff]
        %s958 = scalar_lea.vmem [#allocation8], 96
        %v959 = vld [vmem:[%s958] sm:$0xff]
        %v960 = vld [vmem:[%s958 + $0x8] sm:$0xff]
        %v961 = vld [vmem:[%s958 + $0x10] sm:$0xff]
        %v962 = vld [vmem:[%s958 + $0x18] sm:$0xff]
        %v964 = vsel %vm307, %v957, 0
        %966 = vmatprep.subr.mxu0 0.0
        %967 = vmatpush1.msra.mxu0 %v959
        %968 = vmatprep.subr.mxu0 0.0
        %969 = vmatpush1.msra.mxu0 %v960
        %970 = vmatprep.subr.mxu0 0.0
        %971 = vmatpush1.msra.mxu0 %v961
        %972 = vmatprep.subr.mxu0 0.0
        %973 = vmatpush1.msra.mxu0 %v962
        %974 = vmatprep.subr.mxu0 0.0
        %975 = vmatpush1.msra.mxu0 0.0
        %976 = vmatprep.subr.mxu0 0.0
        %977 = vmatpush1.msra.mxu0 0.0
        %978 = vmatprep.subr.mxu0 0.0
        %979 = vmatpush1.msra.mxu0 0.0
        %980 = vmatprep.subr.mxu0 0.0
        %981 = vmatpush1.msra.mxu0 0.0
        %982 = vmatprep.subr.mxu0 0.0
        %983 = vmatpush1.msra.mxu0 0.0
        %984 = vmatprep.subr.mxu0 0.0
        %985 = vmatpush1.msra.mxu0 0.0
        %986 = vmatprep.subr.mxu0 0.0
        %987 = vmatpush1.msra.mxu0 0.0
        %988 = vmatprep.subr.mxu0 0.0
        %989 = vmatpush1.msra.mxu0 0.0
        %990 = vmatprep.subr.mxu0 0.0
        %991 = vmatpush1.msra.mxu0 0.0
        %992 = vmatprep.subr.mxu0 0.0
        %993 = vmatpush1.msra.mxu0 0.0
        %994 = vmatprep.subr.mxu0 0.0
        %995 = vmatpush1.msra.mxu0 0.0
        %996 = vmatprep.subr.mxu0 0.0
        %997 = vmatpush1.msra.mxu0 0.0
        %998 = vmatprep.subr.mxu0 0.0
        %999 = vmatpush1.msra.mxu0 0.0
        %1000 = vmatprep.subr.mxu0 0.0
        %1001 = vmatpush1.msra.mxu0 0.0
        %1002 = vmatprep.subr.mxu0 0.0
        %1003 = vmatpush1.msra.mxu0 0.0
        %1004 = vmatprep.subr.mxu0 0.0
        %1005 = vmatpush1.msra.mxu0 0.0
        %1006 = vmatprep.subr.mxu0 0.0
        %1007 = vmatpush1.msra.mxu0 0.0
        %1008 = vmatprep.subr.mxu0 0.0
        %1009 = vmatpush1.msra.mxu0 0.0
        %1010 = vmatprep.subr.mxu0 0.0
        %1011 = vmatpush1.msra.mxu0 0.0
        %1012 = vmatprep.subr.mxu0 0.0
        %1013 = vmatpush1.msra.mxu0 0.0
        %1014 = vmatprep.subr.mxu0 0.0
        %1015 = vmatpush1.msra.mxu0 0.0
        %1016 = vmatprep.subr.mxu0 0.0
        %1017 = vmatpush1.msra.mxu0 0.0
        %1018 = vmatprep.subr.mxu0 0.0
        %1019 = vmatpush1.msra.mxu0 0.0
        %1020 = vmatprep.subr.mxu0 0.0
        %1021 = vmatpush1.msra.mxu0 0.0
        %1022 = vmatprep.subr.mxu0 0.0
        %1023 = vmatpush1.msra.mxu0 0.0
        %1024 = vmatprep.subr.mxu0 0.0
        %1025 = vmatpush1.msra.mxu0 0.0
        %1026 = vmatprep.subr.mxu0 0.0
        %1027 = vmatpush1.msra.mxu0 0.0
        %1028 = vmatprep.subr.mxu0 0.0
        %1029 = vmatpush1.msra.mxu0 0.0
        %1030 = vmatprep.mubr.f32.mxu0 0.0
        %1031 = vmatmul.mubr.f32.gmra.mrb[0].mxu0 %v964
        %v1032 = vpop.f32.mrb[0].mxu0
        %v1033 = vadd.f32 0.0, %v1032
        %v1034 = vpop.f32.mrb[0].mxu0
        %1035 = vdwg.mxu0
        %v1036 = vadd.f32 %v956, %v1033
        %v1037 = vld [vmem:[#allocation2 + $0xa] sm:$0xff]
        %s1038 = scalar_lea.vmem [#allocation8], 128
        %v1039 = vld [vmem:[%s1038] sm:$0xff]
        %v1040 = vld [vmem:[%s1038 + $0x8] sm:$0xff]
        %v1041 = vld [vmem:[%s1038 + $0x10] sm:$0xff]
        %v1042 = vld [vmem:[%s1038 + $0x18] sm:$0xff]
        %v1044 = vsel %vm307, %v1037, 0
        %1046 = vmatprep.subr.mxu0 0.0
        %1047 = vmatpush1.msra.mxu0 %v1039
        %1048 = vmatprep.subr.mxu0 0.0
        %1049 = vmatpush1.msra.mxu0 %v1040
        %1050 = vmatprep.subr.mxu0 0.0
        %1051 = vmatpush1.msra.mxu0 %v1041
        %1052 = vmatprep.subr.mxu0 0.0
        %1053 = vmatpush1.msra.mxu0 %v1042
        %1054 = vmatprep.subr.mxu0 0.0
        %1055 = vmatpush1.msra.mxu0 0.0
        %1056 = vmatprep.subr.mxu0 0.0
        %1057 = vmatpush1.msra.mxu0 0.0
        %1058 = vmatprep.subr.mxu0 0.0
        %1059 = vmatpush1.msra.mxu0 0.0
        %1060 = vmatprep.subr.mxu0 0.0
        %1061 = vmatpush1.msra.mxu0 0.0
        %1062 = vmatprep.subr.mxu0 0.0
        %1063 = vmatpush1.msra.mxu0 0.0
        %1064 = vmatprep.subr.mxu0 0.0
        %1065 = vmatpush1.msra.mxu0 0.0
        %1066 = vmatprep.subr.mxu0 0.0
        %1067 = vmatpush1.msra.mxu0 0.0
        %1068 = vmatprep.subr.mxu0 0.0
        %1069 = vmatpush1.msra.mxu0 0.0
        %1070 = vmatprep.subr.mxu0 0.0
        %1071 = vmatpush1.msra.mxu0 0.0
        %1072 = vmatprep.subr.mxu0 0.0
        %1073 = vmatpush1.msra.mxu0 0.0
        %1074 = vmatprep.subr.mxu0 0.0
        %1075 = vmatpush1.msra.mxu0 0.0
        %1076 = vmatprep.subr.mxu0 0.0
        %1077 = vmatpush1.msra.mxu0 0.0
        %1078 = vmatprep.subr.mxu0 0.0
        %1079 = vmatpush1.msra.mxu0 0.0
        %1080 = vmatprep.subr.mxu0 0.0
        %1081 = vmatpush1.msra.mxu0 0.0
        %1082 = vmatprep.subr.mxu0 0.0
        %1083 = vmatpush1.msra.mxu0 0.0
        %1084 = vmatprep.subr.mxu0 0.0
        %1085 = vmatpush1.msra.mxu0 0.0
        %1086 = vmatprep.subr.mxu0 0.0
        %1087 = vmatpush1.msra.mxu0 0.0
        %1088 = vmatprep.subr.mxu0 0.0
        %1089 = vmatpush1.msra.mxu0 0.0
        %1090 = vmatprep.subr.mxu0 0.0
        %1091 = vmatpush1.msra.mxu0 0.0
        %1092 = vmatprep.subr.mxu0 0.0
        %1093 = vmatpush1.msra.mxu0 0.0
        %1094 = vmatprep.subr.mxu0 0.0
        %1095 = vmatpush1.msra.mxu0 0.0
        %1096 = vmatprep.subr.mxu0 0.0
        %1097 = vmatpush1.msra.mxu0 0.0
        %1098 = vmatprep.subr.mxu0 0.0
        %1099 = vmatpush1.msra.mxu0 0.0
        %1100 = vmatprep.subr.mxu0 0.0
        %1101 = vmatpush1.msra.mxu0 0.0
        %1102 = vmatprep.subr.mxu0 0.0
        %1103 = vmatpush1.msra.mxu0 0.0
        %1104 = vmatprep.subr.mxu0 0.0
        %1105 = vmatpush1.msra.mxu0 0.0
        %1106 = vmatprep.subr.mxu0 0.0
        %1107 = vmatpush1.msra.mxu0 0.0
        %1108 = vmatprep.subr.mxu0 0.0
        %1109 = vmatpush1.msra.mxu0 0.0
        %1110 = vmatprep.mubr.f32.mxu0 0.0
        %1111 = vmatmul.mubr.f32.gmra.mrb[0].mxu0 %v1044
        %v1112 = vpop.f32.mrb[0].mxu0
        %v1113 = vadd.f32 0.0, %v1112
        %v1114 = vpop.f32.mrb[0].mxu0
        %1115 = vdwg.mxu0
        %v1116 = vadd.f32 %v1036, %v1113
        %v1117 = vld [vmem:[%s4] sm:$0x1]
        %v1119 = vlaneseq
        %v1120 = vshrl.u32 %v1119, 7
        %v1121 = vsub.s32 0, %v1120
        %v1122 = vrot.slane %v1117, %v1121
        %v1124 = vadd.f32 %v1116, %v1122
        %v1125 = vmax.f32 %v1124, 0.0
        %1126 = vst.msk [vmem:[%s306] sm:$0xff] %vm307, %v1125
        %1128 = vrot.lane.b32.xlu0 %v718, 32
        %v1129 = vpop.permute.xlu0 %1128
        %1132 = vrot.lane.b32.xlu0 %v1125, 64
        %v1133 = vpop.permute.xlu0 %1132
        %v1135 = vsel %vm307, %v311, %v1129
        %vm1136 = vcmask 523264
        %v1137 = vsel %vm1136, %v1135, %v1133
        %vm1138 = vcmask 785408
        %1139 = vst.msk [vmem:[%s299] sm:$0xff] %vm1138, %v1137
        %s1140 = sand.u32 %s146, 1
        %s1141 = scalar_lea.sflag [#allocation5], %s1140
        %s1142 = sand.u32 %s146, 1
        %s1143 = smul.addr %s1142, 8
        %s1144 = scalar_lea.vmem [#allocation9], %s1143
        %s1145 = sand.u32 %s172, 1
        %s1146 = scalar_lea.sflag [#allocation11], %s1145
        %s1147 = sand.u32 %s172, 1
        %s1148 = smul.addr %s1147, 8
        %s1149 = scalar_lea.vmem [#allocation10], %s1148
        // Predicated region
        $region53: #{tpu_custom_call.1} parent=39 // pred_check
          %p1150 = pneg %p156
        $region54: #{tpu_custom_call.1} parent=39 // pred_check_branch
          %1152 = sbr.rel (%p1150) target = $region56
        $region55: #{tpu_custom_call.1} parent=39 // pred_region
          %s1154 = ssub.s32 128, 128
          %1155 = vsyncadd %s1141, %s1154
          %s1156 = smul.addr %s28, 128
          %s1157 = scalar_lea.hbm %s5, %s1156
          %s1159 = sshll.u32 %s1144, 4
          %s1160 = int_to_ptr.vmem [resolvable:$true] %s1159
          %1162 = dma.vmem_to_hbm [thread:$0]  %s1160, 128, %s1157, %s1141
        $region56: #{tpu_custom_call.1} parent=39 // pred_fallthru
          _
        // Predicated region
        $region57: #{tpu_custom_call.1} parent=39 // pred_check
          %p1163 = pneg %p182
        $region58: #{tpu_custom_call.1} parent=39 // pred_check_branch
          %1165 = sbr.rel (%p1163) target = $region60
        $region59: #{tpu_custom_call.1} parent=39 // pred_region
          %s1167 = ssub.s32 128, 128
          %1168 = vsyncadd %s1146, %s1167
          %s1169 = smul.addr %s28, 128
          %s1170 = scalar_lea.hbm %s6, %s1169
          %s1172 = sshll.u32 %s1149, 4
          %s1173 = int_to_ptr.vmem [resolvable:$true] %s1172
          %1175 = dma.vmem_to_hbm [thread:$0]  %s1173, 128, %s1170, %s1146
        $region60: #{tpu_custom_call.1} parent=39 // pred_fallthru
          _
      $region40: #{tpu_custom_call.1} parent=5 // pred_fallthru
        _
      %p1176 = scmp.le.s32.totalorder 2, %s23
      // Predicated region
      $region61: #{tpu_custom_call.1} parent=5 // pred_check
        %p1177 = pneg %p1176
      $region62: #{tpu_custom_call.1} parent=5 // pred_check_branch
        %1179 = sbr.rel (%p1177) target = $region64
      $region63: #{tpu_custom_call.1} parent=5 // pred_region
        %s1180 = ssub.s32 %s23, 2
        // Predicated region
        $region65: #{tpu_custom_call.1} parent=63 // pred_check
          %p1181 = pneg %p162
        $region66: #{tpu_custom_call.1} parent=63 // pred_check_branch
          %1183 = sbr.rel (%p1181) target = $region68
        $region67: #{tpu_custom_call.1} parent=63 // pred_region
          %s1184 = sand.u32 %s147, 1
          %s1185 = scalar_lea.sflag [#allocation5], %s1184
          %s1186 = sand.u32 %s147, 1
          %s1187 = smul.addr %s1186, 8
          %s1188 = scalar_lea.vmem [#allocation9], %s1187
          %1189 = dma.done %s1185, 128
        $region68: #{tpu_custom_call.1} parent=63 // pred_fallthru
          _
        // Predicated region
        $region69: #{tpu_custom_call.1} parent=63 // pred_check
          %p1190 = pneg %p188
        $region70: #{tpu_custom_call.1} parent=63 // pred_check_branch
          %1192 = sbr.rel (%p1190) target = $region72
        $region71: #{tpu_custom_call.1} parent=63 // pred_region
          %s1193 = sand.u32 %s173, 1
          %s1194 = scalar_lea.sflag [#allocation11], %s1193
          %s1195 = sand.u32 %s173, 1
          %s1196 = smul.addr %s1195, 8
          %s1197 = scalar_lea.vmem [#allocation10], %s1196
          %1198 = dma.done %s1194, 128
        $region72: #{tpu_custom_call.1} parent=63 // pred_fallthru
          _
      $region64: #{tpu_custom_call.1} parent=5 // pred_fallthru
        _
    $region6: #{tpu_custom_call.1} parent=1 // loop_footer
      %s27 = sadd.s32 1, %s23
    $region7: #{tpu_custom_call.1} parent=1 // loop_footer_branch
      %22 = sbr.rel target = $region3
    $region8: #{tpu_custom_call.1} parent=1 // loop_exit
      _
    %1199 = vsyncpa [#allocation4], 1
    %s1200 = scalar_lea.sflag [#allocation4], 1
    %1201 = vsyncpa %s1200, 1
    %1202 = vsyncpa [#allocation7], 1
    %1203 = vsyncpa [#allocation5], 1
    %s1204 = scalar_lea.sflag [#allocation5], 1
    %1205 = vsyncpa %s1204, 1
    %1206 = vsyncpa [#allocation11], 1
    %s1207 = scalar_lea.sflag [#allocation11], 1
    %1208 = vsyncpa %s1207, 1

</llo_original>
